<compile_context>
chip_gen: v7x
topology: tpu7x:2x2x1
jax: 0.10.0
libtpu: 0.0.40
codegen_flags: <defaults>
</compile_context>

<pallas_src>
from functools import partial

import jax
import jax.numpy as jnp
from jax.experimental import pallas as pl
from jax.experimental.pallas import tpu as pltpu

# ---------------- config (small synthetic sizes) ----------------
BATCH = 2
C_IN = 4
H = W = 16
C_MID = 8
FEAT_DIM = 32
QUEUE_LEN = 256          # must be divisible by BATCH (matches assert in module)
MOMENTUM = 0.999
TEMPERATURE = 0.1        # ContrastiveHead default
EPS = 1e-12              # torch F.normalize eps


def _vmem():
    return pl.BlockSpec(memory_space=pltpu.MemorySpace.VMEM)


def _smem():
    return pl.BlockSpec(memory_space=pltpu.MemorySpace.SMEM)


def _encode(x, w1, b1, w2, b2):
    """backbone(1x1 conv + ReLU) -> neck(GAP + Linear) -> F.normalize(dim=1).

    x: (N, C_IN, S) with S = H*W on the lane axis. Only 2-D dot_generals
    (no transposes / relayouts); the spatial axis stays lane-dense throughout.
    N is tiny, so the per-sample loop is unrolled at trace time.
    """
    cols = []
    for n in range(x.shape[0]):
        # 1x1 conv over channels == w1^T @ x[n]  -> (C_MID, S), S on lanes
        hn = jax.lax.dot_general(w1, x[n], (((0,), (0,)), ((), ())),
                                 preferred_element_type=jnp.float32)
        hn = jnp.maximum(hn + b1, 0.0)                # b1: (C_MID, 1) broadcasts over lanes
        cols.append(jnp.mean(hn, axis=1, keepdims=True))   # GAP -> (C_MID, 1)
    pooled = jnp.concatenate(cols, axis=1)            # (C_MID, N)
    f = jax.lax.dot_general(pooled, w2, (((0,), (0,)), ((), ())),
                            preferred_element_type=jnp.float32) + b2  # (N, FEAT_DIM)
    # F.normalize(f, dim=1) == f / max(||f||, eps) == f * rsqrt(max(||f||^2, eps^2))
    ss = jnp.sum(f * f, axis=1, keepdims=True)
    return f * jax.lax.rsqrt(jnp.maximum(ss, EPS * EPS))


def _moco_step_kernel(
    # inputs
    x_ref,                                   # (N, 2, C_IN, H*W)        [VMEM]
    w1q_ref, b1q_ref, w2q_ref, b2q_ref,      # encoder_q params         [VMEM]
    w1k_ref, b1k_ref, w2k_ref, b2k_ref,      # encoder_k params (old)   [VMEM]
    queue_hbm_in,                            # (QUEUE_LEN, FEAT_DIM)    [HBM, aliased]
    ptr_ref,                                 # (1,) int32               [SMEM]
    # outputs
    loss_ref,                                # (1, 1) f32               [SMEM]
    w1k_out, b1k_out, w2k_out, b2k_out,      # encoder_k params (new)   [VMEM, aliased]
    queue_hbm_out,                           # (QUEUE_LEN, FEAT_DIM)    [HBM, aliased]
    ptr_out_ref,                             # (1,) int32               [SMEM]
    # scratch
    queue_vmem, kbuf, sem,
):
    # Kick off queue HBM -> VMEM DMA now; it overlaps with the EMA + encoders.
    qcopy = pltpu.make_async_copy(queue_hbm_in, queue_vmem, sem.at[0])
    qcopy.start()

    # ---- momentum update of key encoder (before encoding im_k, like PyTorch) ----
    m = MOMENTUM
    w1k = w1k_ref[...] * m + w1q_ref[...] * (1.0 - m)
    b1k = b1k_ref[...] * m + b1q_ref[...] * (1.0 - m)
    w2k = w2k_ref[...] * m + w2q_ref[...] * (1.0 - m)
    b2k = b2k_ref[...] * m + b2q_ref[...] * (1.0 - m)
    w1k_out[...] = w1k
    b1k_out[...] = b1k
    w2k_out[...] = w2k
    b2k_out[...] = b2k

    # ---- both encoders in one launch ----
    # TODO(synk): _batch_shuffle_ddp / _batch_unshuffle_ddp and concat_all_gather
    # use torch.distributed; with world_size==1 and no BatchNorm they are no-ops.
    x = x_ref[...]
    q = _encode(x[:, 0], w1q_ref[...], b1q_ref[...], w2q_ref[...], b2q_ref[...])
    k = _encode(x[:, 1], w1k, b1k, w2k, b2k)   # key branch uses the UPDATED params

    # l_pos needs only q, k — compute before waiting on the queue DMA.
    l_pos = jnp.sum(q * k, axis=1, keepdims=True)                      # (N, 1)
    kbuf[...] = k                                                      # stage new rows

    # ---- queue snapshot ready (== queue.clone().detach()) ----
    qcopy.wait()

    # Dequeue & enqueue: overwrite only the BATCH rows at ptr in the aliased
    # HBM queue. Safe to start now — l_neg reads the VMEM snapshot — and the
    # store overlaps the loss compute below.
    nrows = kbuf.shape[0]
    ptr = ptr_ref[0]
    wcopy = pltpu.make_async_copy(kbuf, queue_hbm_out.at[pl.ds(ptr, nrows)], sem.at[1])
    wcopy.start()

    # ---- ContrastiveHead: CE over [l_pos, l_neg] / T with label 0 ----
    queue = queue_vmem[...]                                            # (K, D) key rows
    l_neg = jax.lax.dot_general(q, queue, (((1,), (1,)), ((), ())),
                                preferred_element_type=jnp.float32)    # (N, K)
    inv_t = 1.0 / TEMPERATURE
    lpos = l_pos * inv_t
    lneg = l_neg * inv_t
    # loss_i = logsumexp([pos, neg]) - pos   (no explicit concat needed)
    mx = jnp.maximum(lpos, jnp.max(lneg, axis=1, keepdims=True))
    lse = mx + jnp.log(jnp.exp(lpos - mx)
                       + jnp.sum(jnp.exp(lneg - mx), axis=1, keepdims=True))
    loss_ref[0, 0] = jnp.mean(lse - lpos)

    # Pointer update; drain the enqueue DMA before the kernel exits.
    wcopy.wait()
    new_ptr = ptr + nrows
    ptr_out_ref[0] = jnp.where(new_ptr >= QUEUE_LEN, new_ptr - QUEUE_LEN, new_ptr)


@partial(jax.jit, donate_argnums=(2, 3))
def moco_forward_train(img, params_q, params_k, queue, queue_ptr):
    """img: (N, 2, C, H, W) -- two augmented views per sample (PyTorch layout)."""
    n, v, c, h, w = img.shape
    assert v == 2 and QUEUE_LEN % n == 0
    x = img.reshape(n, 2, c, h * w)            # free view: NCHW kept, H*W on lanes

    out_shape = (
        jax.ShapeDtypeStruct((1, 1), jnp.float32),                     # loss
        jax.ShapeDtypeStruct(params_k['w1'].shape, jnp.float32),       # new params_k
        jax.ShapeDtypeStruct(params_k['b1'].shape, jnp.float32),
        jax.ShapeDtypeStruct(params_k['w2'].shape, jnp.float32),
        jax.ShapeDtypeStruct(params_k['b2'].shape, jnp.float32),
        jax.ShapeDtypeStruct(queue.shape, jnp.float32),                # queue (aliased)
        jax.ShapeDtypeStruct((1,), jnp.int32),                         # queue_ptr
    )
    loss, w1k, b1k, w2k, b2k, new_queue, new_ptr = pl.pallas_call(
        _moco_step_kernel,
        out_shape=out_shape,
        in_specs=[
            _vmem(),                                # x
            _vmem(), _vmem(), _vmem(), _vmem(),     # params_q
            _vmem(), _vmem(), _vmem(), _vmem(),     # params_k (old)
            pl.BlockSpec(memory_space=pl.ANY),      # queue stays in HBM
            _smem(),                                # queue_ptr
        ],
        out_specs=(
            _smem(),                                # loss
            _vmem(), _vmem(), _vmem(), _vmem(),     # params_k (new)
            pl.BlockSpec(memory_space=pl.ANY),      # queue (same HBM buffer)
            _smem(),                                # queue_ptr
        ),
        scratch_shapes=[
            pltpu.VMEM((QUEUE_LEN, FEAT_DIM), jnp.float32),   # queue snapshot for l_neg GEMM
            pltpu.VMEM((n, FEAT_DIM), jnp.float32),           # staging rows for enqueue
            pltpu.SemaphoreType.DMA((2,)),
        ],
        # in-place updates: old params_k -> new params_k, queue -> queue
        input_output_aliases={5: 1, 6: 2, 7: 3, 8: 4, 9: 5},
    )(x,
      params_q['w1'], params_q['b1'], params_q['w2'], params_q['b2'],
      params_k['w1'], params_k['b1'], params_k['w2'], params_k['b2'],
      queue, queue_ptr)

    new_params_k = {'w1': w1k, 'b1': b1k, 'w2': w2k, 'b2': b2k}
    return loss[0, 0], new_params_k, new_queue, new_ptr


# ---------------- deterministic init ----------------
def init_params(key):
    k1, k2 = jax.random.split(key, 2)
    w1 = jax.random.normal(k1, (C_IN, C_MID), jnp.float32) * (2.0 / C_IN) ** 0.5
    b1 = jnp.zeros((C_MID, 1), jnp.float32)
    w2 = jax.random.normal(k2, (C_MID, FEAT_DIM), jnp.float32) * (2.0 / C_MID) ** 0.5
    b2 = jnp.zeros((1, FEAT_DIM), jnp.float32)
    return {'w1': w1, 'b1': b1, 'w2': w2, 'b2': b2}


if __name__ == "__main__":
    key = jax.random.PRNGKey(0)
    kp, kq, kimg = jax.random.split(key, 3)

    params_q = init_params(kp)
    # init_weights copies encoder_q params into encoder_k (separate buffers so
    # params_k can be donated / updated in place without touching params_q).
    params_k = jax.tree_util.tree_map(jnp.copy, params_q)

    # queue buffer: randn keys, L2-normalized per key; stored row-major (K, D)
    # (== transpose of the PyTorch (feat_dim, queue_len) buffer).
    queue = jax.random.normal(kq, (QUEUE_LEN, FEAT_DIM), jnp.float32)
    queue = queue / jnp.maximum(
        jnp.sqrt(jnp.sum(queue * queue, axis=1, keepdims=True)), EPS)
    queue_ptr = jnp.zeros((1,), jnp.int32)

    img = jax.random.normal(kimg, (BATCH, 2, C_IN, H, W), jnp.float32)

    loss, params_k, queue, queue_ptr = moco_forward_train(
        img, params_q, params_k, queue, queue_ptr)
    jax.block_until_ready((loss, params_k, queue, queue_ptr))
    print("KERNEL_OK")
</pallas_src>

<mosaic_0001>
module attributes {stable_mosaic.version = 11 : i64} {
  func.func @_moco_step_kernel(%arg0: memref<2x2x4x256xf32, #tpu.memory_space<vmem>>, %arg1: memref<4x8xf32, #tpu.memory_space<vmem>>, %arg2: memref<8x1xf32, #tpu.memory_space<vmem>>, %arg3: memref<8x32xf32, #tpu.memory_space<vmem>>, %arg4: memref<1x32xf32, #tpu.memory_space<vmem>>, %arg5: memref<4x8xf32, #tpu.memory_space<vmem>>, %arg6: memref<8x1xf32, #tpu.memory_space<vmem>>, %arg7: memref<8x32xf32, #tpu.memory_space<vmem>>, %arg8: memref<1x32xf32, #tpu.memory_space<vmem>>, %arg9: memref<256x32xf32, #tpu.memory_space<any>>, %arg10: memref<1xi32, #tpu.memory_space<smem>>, %arg11: memref<1x1xf32, #tpu.memory_space<smem>>, %arg12: memref<4x8xf32, #tpu.memory_space<vmem>>, %arg13: memref<8x1xf32, #tpu.memory_space<vmem>>, %arg14: memref<8x32xf32, #tpu.memory_space<vmem>>, %arg15: memref<1x32xf32, #tpu.memory_space<vmem>>, %arg16: memref<256x32xf32, #tpu.memory_space<any>>, %arg17: memref<1xi32, #tpu.memory_space<smem>>, %arg18: memref<256x32xf32, #tpu.memory_space<vmem>>, %arg19: memref<2x32xf32, #tpu.memory_space<vmem>>, %arg20: memref<2x!tpu.dma_semaphore, #tpu.memory_space<semaphore_mem>>) attributes {dimension_semantics = [], scalar_prefetch = 0 : i64, scratch_operands = 3 : i64, tpu.core_type = #tpu.core_type<tc>} {
    %c0_i32 = arith.constant 0 : i32
    %0 = tpu.memref_slice %arg20[%c0_i32] : memref<2x!tpu.dma_semaphore, #tpu.memory_space<semaphore_mem>> -> memref<1x!tpu.dma_semaphore, #tpu.memory_space<semaphore_mem>>
    %1 = tpu.memref_squeeze %0 : memref<1x!tpu.dma_semaphore, #tpu.memory_space<semaphore_mem>> -> memref<!tpu.dma_semaphore, #tpu.memory_space<semaphore_mem>>
    tpu.enqueue_dma source(%arg9 : memref<256x32xf32, #tpu.memory_space<any>>) target(%arg18 : memref<256x32xf32, #tpu.memory_space<vmem>>) target_semaphore(%1 : memref<!tpu.dma_semaphore, #tpu.memory_space<semaphore_mem>>)
    %c0 = arith.constant 0 : index
    %c0_0 = arith.constant 0 : index
    %2 = vector.load %arg5[%c0, %c0_0] : memref<4x8xf32, #tpu.memory_space<vmem>>, vector<4x8xf32>
    %cst = arith.constant 9.990000e-01 : f32
    %3 = vector.broadcast %cst : f32 to vector<4x8xf32>
    %4 = arith.mulf %2, %3 : vector<4x8xf32>
    %c0_1 = arith.constant 0 : index
    %c0_2 = arith.constant 0 : index
    %5 = vector.load %arg1[%c0_1, %c0_2] : memref<4x8xf32, #tpu.memory_space<vmem>>, vector<4x8xf32>
    %cst_3 = arith.constant 1.000000e-03 : f32
    %6 = vector.broadcast %cst_3 : f32 to vector<4x8xf32>
    %7 = arith.mulf %5, %6 : vector<4x8xf32>
    %8 = arith.addf %4, %7 : vector<4x8xf32>
    %c0_4 = arith.constant 0 : index
    %c0_5 = arith.constant 0 : index
    %9 = vector.load %arg6[%c0_4, %c0_5] : memref<8x1xf32, #tpu.memory_space<vmem>>, vector<8x1xf32>
    %cst_6 = arith.constant 9.990000e-01 : f32
    %10 = vector.broadcast %cst_6 : f32 to vector<8x1xf32>
    %11 = arith.mulf %9, %10 : vector<8x1xf32>
    %c0_7 = arith.constant 0 : index
    %c0_8 = arith.constant 0 : index
    %12 = vector.load %arg2[%c0_7, %c0_8] : memref<8x1xf32, #tpu.memory_space<vmem>>, vector<8x1xf32>
    %cst_9 = arith.constant 1.000000e-03 : f32
    %13 = vector.broadcast %cst_9 : f32 to vector<8x1xf32>
    %14 = arith.mulf %12, %13 : vector<8x1xf32>
    %15 = arith.addf %11, %14 : vector<8x1xf32>
    %c0_10 = arith.constant 0 : index
    %c0_11 = arith.constant 0 : index
    %16 = vector.load %arg7[%c0_10, %c0_11] : memref<8x32xf32, #tpu.memory_space<vmem>>, vector<8x32xf32>
    %cst_12 = arith.constant 9.990000e-01 : f32
    %17 = vector.broadcast %cst_12 : f32 to vector<8x32xf32>
    %18 = arith.mulf %16, %17 : vector<8x32xf32>
    %c0_13 = arith.constant 0 : index
    %c0_14 = arith.constant 0 : index
    %19 = vector.load %arg3[%c0_13, %c0_14] : memref<8x32xf32, #tpu.memory_space<vmem>>, vector<8x32xf32>
    %cst_15 = arith.constant 1.000000e-03 : f32
    %20 = vector.broadcast %cst_15 : f32 to vector<8x32xf32>
    %21 = arith.mulf %19, %20 : vector<8x32xf32>
    %22 = arith.addf %18, %21 : vector<8x32xf32>
    %c0_16 = arith.constant 0 : index
    %c0_17 = arith.constant 0 : index
    %23 = vector.load %arg8[%c0_16, %c0_17] : memref<1x32xf32, #tpu.memory_space<vmem>>, vector<1x32xf32>
    %cst_18 = arith.constant 9.990000e-01 : f32
    %24 = vector.broadcast %cst_18 : f32 to vector<1x32xf32>
    %25 = arith.mulf %23, %24 : vector<1x32xf32>
    %c0_19 = arith.constant 0 : index
    %c0_20 = arith.constant 0 : index
    %26 = vector.load %arg4[%c0_19, %c0_20] : memref<1x32xf32, #tpu.memory_space<vmem>>, vector<1x32xf32>
    %cst_21 = arith.constant 1.000000e-03 : f32
    %27 = vector.broadcast %cst_21 : f32 to vector<1x32xf32>
    %28 = arith.mulf %26, %27 : vector<1x32xf32>
    %29 = arith.addf %25, %28 : vector<1x32xf32>
    %c0_22 = arith.constant 0 : index
    %c0_23 = arith.constant 0 : index
    %30 = vector.load %arg12[%c0_22, %c0_23] : memref<4x8xf32, #tpu.memory_space<vmem>>, vector<4x8xf32>
    tpu.vector_store %arg12[%c0_22, %c0_23], %8 {strides = array<i32>} : memref<4x8xf32, #tpu.memory_space<vmem>>, vector<4x8xf32>,
    %c0_24 = arith.constant 0 : index
    %c0_25 = arith.constant 0 : index
    %31 = vector.load %arg13[%c0_24, %c0_25] : memref<8x1xf32, #tpu.memory_space<vmem>>, vector<8x1xf32>
    tpu.vector_store %arg13[%c0_24, %c0_25], %15 {strides = array<i32>} : memref<8x1xf32, #tpu.memory_space<vmem>>, vector<8x1xf32>,
    %c0_26 = arith.constant 0 : index
    %c0_27 = arith.constant 0 : index
    %32 = vector.load %arg14[%c0_26, %c0_27] : memref<8x32xf32, #tpu.memory_space<vmem>>, vector<8x32xf32>
    tpu.vector_store %arg14[%c0_26, %c0_27], %22 {strides = array<i32>} : memref<8x32xf32, #tpu.memory_space<vmem>>, vector<8x32xf32>,
    %c0_28 = arith.constant 0 : index
    %c0_29 = arith.constant 0 : index
    %33 = vector.load %arg15[%c0_28, %c0_29] : memref<1x32xf32, #tpu.memory_space<vmem>>, vector<1x32xf32>
    tpu.vector_store %arg15[%c0_28, %c0_29], %29 {strides = array<i32>} : memref<1x32xf32, #tpu.memory_space<vmem>>, vector<1x32xf32>,
    %c0_30 = arith.constant 0 : index
    %c0_31 = arith.constant 0 : index
    %c0_32 = arith.constant 0 : index
    %c0_33 = arith.constant 0 : index
    %34 = vector.load %arg0[%c0_30, %c0_31, %c0_32, %c0_33] : memref<2x2x4x256xf32, #tpu.memory_space<vmem>>, vector<2x2x4x256xf32>
    %35 = vector.extract_strided_slice %34 {offsets = [0, 0, 0, 0], sizes = [2, 1, 4, 256], strides = [1, 1, 1, 1]} : vector<2x2x4x256xf32> to vector<2x1x4x256xf32>
    %36 = vector.shape_cast %35 : vector<2x1x4x256xf32> to vector<2x4x256xf32>
    %c0_34 = arith.constant 0 : index
    %c0_35 = arith.constant 0 : index
    %37 = vector.load %arg1[%c0_34, %c0_35] : memref<4x8xf32, #tpu.memory_space<vmem>>, vector<4x8xf32>
    %c0_36 = arith.constant 0 : index
    %c0_37 = arith.constant 0 : index
    %38 = vector.load %arg2[%c0_36, %c0_37] : memref<8x1xf32, #tpu.memory_space<vmem>>, vector<8x1xf32>
    %c0_38 = arith.constant 0 : index
    %c0_39 = arith.constant 0 : index
    %39 = vector.load %arg3[%c0_38, %c0_39] : memref<8x32xf32, #tpu.memory_space<vmem>>, vector<8x32xf32>
    %c0_40 = arith.constant 0 : index
    %c0_41 = arith.constant 0 : index
    %40 = vector.load %arg4[%c0_40, %c0_41] : memref<1x32xf32, #tpu.memory_space<vmem>>, vector<1x32xf32>
    %41 = vector.extract_strided_slice %36 {offsets = [0, 0, 0], sizes = [1, 4, 256], strides = [1, 1, 1]} : vector<2x4x256xf32> to vector<1x4x256xf32>
    %42 = vector.shape_cast %41 : vector<1x4x256xf32> to vector<4x256xf32>
    %cst_42 = arith.constant dense<0.000000e+00> : vector<8x256xf32>
    %43 = tpu.matmul %37, %42, %cst_42 {dimension_numbers = #tpu.dot_dimension_numbers<[0], [0], [1], [1], [0, 1, 1, 1], [], []>} : vector<4x8xf32>, vector<4x256xf32>, vector<8x256xf32> -> vector<8x256xf32>
    %44 = vector.broadcast %38 : vector<8x1xf32> to vector<8x256xf32>
    %45 = arith.addf %43, %44 : vector<8x256xf32>
    %cst_43 = arith.constant 0.000000e+00 : f32
    %46 = vector.broadcast %cst_43 : f32 to vector<8x256xf32>
    %47 = arith.maximumf %45, %46 : vector<8x256xf32>
    %cst_44 = arith.constant dense<0.000000e+00> : vector<8xf32>
    %48 = vector.multi_reduction <add>, %47, %cst_44 [1] : vector<8x256xf32> to vector<8xf32>
    %49 = vector.shape_cast %48 : vector<8xf32> to vector<8x1xf32>
    %cst_45 = arith.constant 2.560000e+02 : f32
    %50 = vector.broadcast %cst_45 : f32 to vector<8x1xf32>
    %51 = arith.divf %49, %50 : vector<8x1xf32>
    %52 = vector.extract_strided_slice %36 {offsets = [1, 0, 0], sizes = [1, 4, 256], strides = [1, 1, 1]} : vector<2x4x256xf32> to vector<1x4x256xf32>
    %53 = vector.shape_cast %52 : vector<1x4x256xf32> to vector<4x256xf32>
    %cst_46 = arith.constant dense<0.000000e+00> : vector<8x256xf32>
    %54 = tpu.matmul %37, %53, %cst_46 {dimension_numbers = #tpu.dot_dimension_numbers<[0], [0], [1], [1], [0, 1, 1, 1], [], []>} : vector<4x8xf32>, vector<4x256xf32>, vector<8x256xf32> -> vector<8x256xf32>
    %55 = vector.broadcast %38 : vector<8x1xf32> to vector<8x256xf32>
    %56 = arith.addf %54, %55 : vector<8x256xf32>
    %cst_47 = arith.constant 0.000000e+00 : f32
    %57 = vector.broadcast %cst_47 : f32 to vector<8x256xf32>
    %58 = arith.maximumf %56, %57 : vector<8x256xf32>
    %cst_48 = arith.constant dense<0.000000e+00> : vector<8xf32>
    %59 = vector.multi_reduction <add>, %58, %cst_48 [1] : vector<8x256xf32> to vector<8xf32>
    %60 = vector.shape_cast %59 : vector<8xf32> to vector<8x1xf32>
    %cst_49 = arith.constant 2.560000e+02 : f32
    %61 = vector.broadcast %cst_49 : f32 to vector<8x1xf32>
    %62 = arith.divf %60, %61 : vector<8x1xf32>
    %63 = tpu.concatenate %51, %62 in 1 : vector<8x1xf32>, vector<8x1xf32> -> vector<8x2xf32>
    %cst_50 = arith.constant dense<0.000000e+00> : vector<2x32xf32>
    %64 = tpu.matmul %63, %39, %cst_50 {dimension_numbers = #tpu.dot_dimension_numbers<[0], [0], [1], [1], [0, 1, 1, 1], [], []>} : vector<8x2xf32>, vector<8x32xf32>, vector<2x32xf32> -> vector<2x32xf32>
    %65 = vector.broadcast %40 : vector<1x32xf32> to vector<2x32xf32>
    %66 = arith.addf %64, %65 : vector<2x32xf32>
    %67 = arith.mulf %66, %66 : vector<2x32xf32>
    %cst_51 = arith.constant dense<0.000000e+00> : vector<2xf32>
    %68 = vector.multi_reduction <add>, %67, %cst_51 [1] : vector<2x32xf32> to vector<2xf32>
    %69 = vector.shape_cast %68 : vector<2xf32> to vector<2x1xf32>
    %cst_52 = arith.constant 1.000000e-24 : f32
    %70 = vector.broadcast %cst_52 : f32 to vector<2x1xf32>
    %71 = arith.maximumf %69, %70 : vector<2x1xf32>
    %72 = math.rsqrt %71 : vector<2x1xf32>
    %73 = vector.broadcast %72 : vector<2x1xf32> to vector<2x32xf32>
    %74 = arith.mulf %66, %73 : vector<2x32xf32>
    %75 = vector.extract_strided_slice %34 {offsets = [0, 1, 0, 0], sizes = [2, 1, 4, 256], strides = [1, 1, 1, 1]} : vector<2x2x4x256xf32> to vector<2x1x4x256xf32>
    %76 = vector.shape_cast %75 : vector<2x1x4x256xf32> to vector<2x4x256xf32>
    %77 = vector.extract_strided_slice %76 {offsets = [0, 0, 0], sizes = [1, 4, 256], strides = [1, 1, 1]} : vector<2x4x256xf32> to vector<1x4x256xf32>
    %78 = vector.shape_cast %77 : vector<1x4x256xf32> to vector<4x256xf32>
    %cst_53 = arith.constant dense<0.000000e+00> : vector<8x256xf32>
    %79 = tpu.matmul %8, %78, %cst_53 {dimension_numbers = #tpu.dot_dimension_numbers<[0], [0], [1], [1], [0, 1, 1, 1], [], []>} : vector<4x8xf32>, vector<4x256xf32>, vector<8x256xf32> -> vector<8x256xf32>
    %80 = vector.broadcast %15 : vector<8x1xf32> to vector<8x256xf32>
    %81 = arith.addf %79, %80 : vector<8x256xf32>
    %cst_54 = arith.constant 0.000000e+00 : f32
    %82 = vector.broadcast %cst_54 : f32 to vector<8x256xf32>
    %83 = arith.maximumf %81, %82 : vector<8x256xf32>
    %cst_55 = arith.constant dense<0.000000e+00> : vector<8xf32>
    %84 = vector.multi_reduction <add>, %83, %cst_55 [1] : vector<8x256xf32> to vector<8xf32>
    %85 = vector.shape_cast %84 : vector<8xf32> to vector<8x1xf32>
    %cst_56 = arith.constant 2.560000e+02 : f32
    %86 = vector.broadcast %cst_56 : f32 to vector<8x1xf32>
    %87 = arith.divf %85, %86 : vector<8x1xf32>
    %88 = vector.extract_strided_slice %76 {offsets = [1, 0, 0], sizes = [1, 4, 256], strides = [1, 1, 1]} : vector<2x4x256xf32> to vector<1x4x256xf32>
    %89 = vector.shape_cast %88 : vector<1x4x256xf32> to vector<4x256xf32>
    %cst_57 = arith.constant dense<0.000000e+00> : vector<8x256xf32>
    %90 = tpu.matmul %8, %89, %cst_57 {dimension_numbers = #tpu.dot_dimension_numbers<[0], [0], [1], [1], [0, 1, 1, 1], [], []>} : vector<4x8xf32>, vector<4x256xf32>, vector<8x256xf32> -> vector<8x256xf32>
    %91 = vector.broadcast %15 : vector<8x1xf32> to vector<8x256xf32>
    %92 = arith.addf %90, %91 : vector<8x256xf32>
    %cst_58 = arith.constant 0.000000e+00 : f32
    %93 = vector.broadcast %cst_58 : f32 to vector<8x256xf32>
    %94 = arith.maximumf %92, %93 : vector<8x256xf32>
    %cst_59 = arith.constant dense<0.000000e+00> : vector<8xf32>
    %95 = vector.multi_reduction <add>, %94, %cst_59 [1] : vector<8x256xf32> to vector<8xf32>
    %96 = vector.shape_cast %95 : vector<8xf32> to vector<8x1xf32>
    %cst_60 = arith.constant 2.560000e+02 : f32
    %97 = vector.broadcast %cst_60 : f32 to vector<8x1xf32>
    %98 = arith.divf %96, %97 : vector<8x1xf32>
    %99 = tpu.concatenate %87, %98 in 1 : vector<8x1xf32>, vector<8x1xf32> -> vector<8x2xf32>
    %cst_61 = arith.constant dense<0.000000e+00> : vector<2x32xf32>
    %100 = tpu.matmul %99, %22, %cst_61 {dimension_numbers = #tpu.dot_dimension_numbers<[0], [0], [1], [1], [0, 1, 1, 1], [], []>} : vector<8x2xf32>, vector<8x32xf32>, vector<2x32xf32> -> vector<2x32xf32>
    %101 = vector.broadcast %29 : vector<1x32xf32> to vector<2x32xf32>
    %102 = arith.addf %100, %101 : vector<2x32xf32>
    %103 = arith.mulf %102, %102 : vector<2x32xf32>
    %cst_62 = arith.constant dense<0.000000e+00> : vector<2xf32>
    %104 = vector.multi_reduction <add>, %103, %cst_62 [1] : vector<2x32xf32> to vector<2xf32>
    %105 = vector.shape_cast %104 : vector<2xf32> to vector<2x1xf32>
    %cst_63 = arith.constant 1.000000e-24 : f32
    %106 = vector.broadcast %cst_63 : f32 to vector<2x1xf32>
    %107 = arith.maximumf %105, %106 : vector<2x1xf32>
    %108 = math.rsqrt %107 : vector<2x1xf32>
    %109 = vector.broadcast %108 : vector<2x1xf32> to vector<2x32xf32>
    %110 = arith.mulf %102, %109 : vector<2x32xf32>
    %111 = arith.mulf %74, %110 : vector<2x32xf32>
    %cst_64 = arith.constant dense<0.000000e+00> : vector<2xf32>
    %112 = vector.multi_reduction <add>, %111, %cst_64 [1] : vector<2x32xf32> to vector<2xf32>
    %113 = vector.shape_cast %112 : vector<2xf32> to vector<2x1xf32>
    %c0_65 = arith.constant 0 : index
    %c0_66 = arith.constant 0 : index
    %114 = vector.load %arg19[%c0_65, %c0_66] : memref<2x32xf32, #tpu.memory_space<vmem>>, vector<2x32xf32>
    tpu.vector_store %arg19[%c0_65, %c0_66], %110 {strides = array<i32>} : memref<2x32xf32, #tpu.memory_space<vmem>>, vector<2x32xf32>,
    %c0_i32_67 = arith.constant 0 : i32
    %115 = tpu.memref_slice %arg20[%c0_i32_67] : memref<2x!tpu.dma_semaphore, #tpu.memory_space<semaphore_mem>> -> memref<1x!tpu.dma_semaphore, #tpu.memory_space<semaphore_mem>>
    %116 = tpu.memref_squeeze %115 : memref<1x!tpu.dma_semaphore, #tpu.memory_space<semaphore_mem>> -> memref<!tpu.dma_semaphore, #tpu.memory_space<semaphore_mem>>
    tpu.wait_dma2 semaphore(%116 : memref<!tpu.dma_semaphore, #tpu.memory_space<semaphore_mem>>) src(%arg9 : memref<256x32xf32, #tpu.memory_space<any>>) dst(%arg18 : memref<256x32xf32, #tpu.memory_space<vmem>>)
    %c0_68 = arith.constant 0 : index
    %117 = memref.load %arg10[%c0_68] : memref<1xi32, #tpu.memory_space<smem>>
    %c1_i32 = arith.constant 1 : i32
    %c0_i32_69 = arith.constant 0 : i32
    %118 = tpu.memref_slice %arg16[%117, %c0_i32_69] : memref<256x32xf32, #tpu.memory_space<any>> -> memref<2x32xf32, #tpu.memory_space<any>>
    %119 = tpu.memref_slice %arg20[%c1_i32] : memref<2x!tpu.dma_semaphore, #tpu.memory_space<semaphore_mem>> -> memref<1x!tpu.dma_semaphore, #tpu.memory_space<semaphore_mem>>
    %120 = tpu.memref_squeeze %119 : memref<1x!tpu.dma_semaphore, #tpu.memory_space<semaphore_mem>> -> memref<!tpu.dma_semaphore, #tpu.memory_space<semaphore_mem>>
    tpu.enqueue_dma source(%arg19 : memref<2x32xf32, #tpu.memory_space<vmem>>) target(%118 : memref<2x32xf32, #tpu.memory_space<any>>) target_semaphore(%120 : memref<!tpu.dma_semaphore, #tpu.memory_space<semaphore_mem>>)
    %c0_70 = arith.constant 0 : index
    %c0_71 = arith.constant 0 : index
    %121 = vector.load %arg18[%c0_70, %c0_71] : memref<256x32xf32, #tpu.memory_space<vmem>>, vector<256x32xf32>
    %cst_72 = arith.constant dense<0.000000e+00> : vector<2x256xf32>
    %122 = tpu.matmul %74, %121, %cst_72 {dimension_numbers = #tpu.dot_dimension_numbers<[1], [1], [0], [0], [0, 0, 1, 0], [], []>} : vector<2x32xf32>, vector<256x32xf32>, vector<2x256xf32> -> vector<2x256xf32>
    %cst_73 = arith.constant 1.000000e+01 : f32
    %123 = vector.broadcast %cst_73 : f32 to vector<2x1xf32>
    %124 = arith.mulf %113, %123 : vector<2x1xf32>
    %cst_74 = arith.constant 1.000000e+01 : f32
    %125 = vector.broadcast %cst_74 : f32 to vector<2x256xf32>
    %126 = arith.mulf %122, %125 : vector<2x256xf32>
    %cst_75 = arith.constant dense<0xFF800000> : vector<2xf32>
    %127 = vector.multi_reduction <maximumf>, %126, %cst_75 [1] : vector<2x256xf32> to vector<2xf32>
    %128 = vector.shape_cast %127 : vector<2xf32> to vector<2x1xf32>
    %129 = arith.maximumf %124, %128 : vector<2x1xf32>
    %130 = arith.subf %124, %129 : vector<2x1xf32>
    %131 = math.exp %130 : vector<2x1xf32>
    %132 = vector.broadcast %129 : vector<2x1xf32> to vector<2x256xf32>
    %133 = arith.subf %126, %132 : vector<2x256xf32>
    %134 = math.exp %133 : vector<2x256xf32>
    %cst_76 = arith.constant dense<0.000000e+00> : vector<2xf32>
    %135 = vector.multi_reduction <add>, %134, %cst_76 [1] : vector<2x256xf32> to vector<2xf32>
    %136 = vector.shape_cast %135 : vector<2xf32> to vector<2x1xf32>
    %137 = arith.addf %131, %136 : vector<2x1xf32>
    %138 = math.log %137 : vector<2x1xf32>
    %139 = arith.addf %129, %138 : vector<2x1xf32>
    %140 = arith.subf %139, %124 : vector<2x1xf32>
    %141 = vector.shape_cast %140 : vector<2x1xf32> to vector<1x2x1xf32>
    %cst_77 = arith.constant dense<0.000000e+00> : vector<1xf32>
    %142 = vector.multi_reduction <add>, %141, %cst_77 [1, 2] : vector<1x2x1xf32> to vector<1xf32>
    %143 = vector.shape_cast %142 : vector<1xf32> to vector<1x1x1xf32>
    %144 = vector.extract %143[0, 0, 0] : f32 from vector<1x1x1xf32>
    %cst_78 = arith.constant 2.000000e+00 : f32
    %145 = arith.divf %144, %cst_78 : f32
    %c0_79 = arith.constant 0 : index
    %c0_80 = arith.constant 0 : index
    %146 = memref.load %arg11[%c0_79, %c0_80] : memref<1x1xf32, #tpu.memory_space<smem>>
    memref.store %145, %arg11[%c0_79, %c0_80] : memref<1x1xf32, #tpu.memory_space<smem>>
    %c1_i32_81 = arith.constant 1 : i32
    %c0_i32_82 = arith.constant 0 : i32
    %147 = tpu.memref_slice %arg16[%117, %c0_i32_82] : memref<256x32xf32, #tpu.memory_space<any>> -> memref<2x32xf32, #tpu.memory_space<any>>
    %148 = tpu.memref_slice %arg20[%c1_i32_81] : memref<2x!tpu.dma_semaphore, #tpu.memory_space<semaphore_mem>> -> memref<1x!tpu.dma_semaphore, #tpu.memory_space<semaphore_mem>>
    %149 = tpu.memref_squeeze %148 : memref<1x!tpu.dma_semaphore, #tpu.memory_space<semaphore_mem>> -> memref<!tpu.dma_semaphore, #tpu.memory_space<semaphore_mem>>
    tpu.wait_dma2 semaphore(%149 : memref<!tpu.dma_semaphore, #tpu.memory_space<semaphore_mem>>) src(%arg19 : memref<2x32xf32, #tpu.memory_space<vmem>>) dst(%147 : memref<2x32xf32, #tpu.memory_space<any>>)
    %c2_i32 = arith.constant 2 : i32
    %150 = arith.addi %117, %c2_i32 : i32
    %c256_i32 = arith.constant 256 : i32
    %151 = arith.cmpi sge, %150, %c256_i32 : i32
    %c256_i32_83 = arith.constant 256 : i32
    %152 = arith.subi %150, %c256_i32_83 : i32
    %153 = arith.select %151, %152, %150 : i32
    %c0_84 = arith.constant 0 : index
    %154 = memref.load %arg17[%c0_84] : memref<1xi32, #tpu.memory_space<smem>>
    memref.store %153, %arg17[%c0_84] : memref<1xi32, #tpu.memory_space<smem>>
    return
  }
}

</mosaic_0001>

<llo_original>
// kernel: moco_forward_train.1
$region0: #{moco_forward_train.1}
  #allocation0 [shape = 'u32[]', space=smem, size = 0x4, offset = 0x4, fixed_abs, tag = 'smem constant byte address 0x4 - core index']
  #allocation1 [shape = 'u32[144,128]{1,0:T(1,128)}', space=vmem, size = 0x12000, scoped, tag = 'internal scratch']
  #allocation2 [shape = 'f32[256,32]{1,0:T(8,128)}', space=vmem, size = 0x20000, scoped, tag = 'scratch operand']
  #allocation3 [shape = 'f32[2,32]{1,0:T(2,128)}', space=vmem, size = 0x400, scoped, tag = 'scratch operand']
  #allocation4 [shape = 's32[2]{0}', space=sflag, size = 0x8, scoped, tag = 'scratch operand']
  #allocation5 [shape = 's32[1]{0:T(128)S(6)}', space=smem, size = 0x200, scoped, tag = 'scoped memory for moco_forward_train.1']
  #allocation10 [shape = 's32[]', space=sflag, size = 0x4, offset = 0, fixed_abs, tag = 'sflag constant byte address 0x0 - dummy sync flag']
  #allocation11 [shape = 's32[]', space=sflag, size = 0x4, offset = 0, fixed_abs, tag = 'sflag constant byte address 0x0 - dummy sync flag']
  %s0 = inlined_call_operand.vmem [shape: f32[2,2,4,256], index: 0, kind: input, shape index: {}]
  %s1 = inlined_call_operand.vmem [shape: f32[4,8], index: 1, kind: input, shape index: {}]
  %s2 = inlined_call_operand.vmem [shape: f32[8,1], index: 2, kind: input, shape index: {}]
  %s3 = inlined_call_operand.vmem [shape: f32[8,32], index: 3, kind: input, shape index: {}]
  %s4 = inlined_call_operand.vmem [shape: f32[1,32], index: 4, kind: input, shape index: {}]
  %s5 = inlined_call_operand.vmem [shape: f32[4,8], index: 5, kind: input, shape index: {}, may-alias: {5,12}]
  %s6 = inlined_call_operand.vmem [shape: f32[8,1], index: 6, kind: input, shape index: {}, may-alias: {6,13}]
  %s7 = inlined_call_operand.vmem [shape: f32[8,32], index: 7, kind: input, shape index: {}, may-alias: {7,14}]
  %s8 = inlined_call_operand.vmem [shape: f32[1,32], index: 8, kind: input, shape index: {}, may-alias: {8,15}]
  %s9 = inlined_call_operand.vmem [shape: f32[256,32], index: 9, kind: input, shape index: {}, may-alias: {9,16}]
  %s10 = inlined_call_operand.<no memory space> [shape: s32[1], index: 10, kind: input, shape index: {}]
  %s11 = inlined_call_operand.hbm [shape: f32[1,1], index: 11, kind: output, shape index: {0}]
  %s12 = inlined_call_operand.vmem [shape: f32[4,8], index: 12, kind: output, shape index: {1}, may-alias: {5,12}]
  %s13 = inlined_call_operand.vmem [shape: f32[8,1], index: 13, kind: output, shape index: {2}, may-alias: {6,13}]
  %s14 = inlined_call_operand.vmem [shape: f32[8,32], index: 14, kind: output, shape index: {3}, may-alias: {7,14}]
  %s15 = inlined_call_operand.vmem [shape: f32[1,32], index: 15, kind: output, shape index: {4}, may-alias: {8,15}]
  %s16 = inlined_call_operand.vmem [shape: f32[256,32], index: 16, kind: output, shape index: {5}, may-alias: {9,16}]
  %s17 = inlined_call_operand.hbm [shape: s32[1], index: 17, kind: output, shape index: {6}]
  %18 = xla_tuple %s11, %s12, %s13, %s14, %s15, %s16, %s17
  %s19 = sld [smem:[#allocation0]]
  $region154: #{moco_forward_train.1} parent=0
    _
  %s21 = ssub.s32 1, %s19
  %s22 = scalar_select 0, %s21, %s19
  %23 = sst [smem:[#allocation5]] %s10
  $region1: #{moco_forward_train.1} parent=0
    #allocation6 [shape = 'u8[512]{0}', space=smem, size = 0x200, scoped, tag = 'output window, operand 0, single buffered']
    #allocation7 [shape = 's32[1]{0}', space=sflag, size = 0x4, scoped, tag = 'scoped memory for moco_forward_train.1']
    #allocation8 [shape = 'u8[512]{0}', space=smem, size = 0x200, scoped, tag = 'output window, operand 6, single buffered']
    #allocation9 [shape = 's32[1]{0}', space=sflag, size = 0x4, scoped, tag = 'scoped memory for moco_forward_train.1']
    %24 = vsyncpa [#allocation7], 0
    %25 = vsyncpa [#allocation9], 0
    // Predicated region
    $region2: #{moco_forward_train.1} parent=1 // pred_check
      _
    $region3: #{moco_forward_train.1} parent=1 // pred_check_branch
      %27 = sbr.rel (0) target = $region5
    $region4: #{moco_forward_train.1} parent=1 // pred_region
      _
    $region5: #{moco_forward_train.1} parent=1 // pred_fallthru
      _
    // Predicated region
    $region6: #{moco_forward_train.1} parent=1 // pred_check
      _
    $region7: #{moco_forward_train.1} parent=1 // pred_check_branch
      %29 = sbr.rel (0) target = $region9
    $region8: #{moco_forward_train.1} parent=1 // pred_region
      _
    $region9: #{moco_forward_train.1} parent=1 // pred_fallthru
      _
    // Predicated region
    $region10: #{moco_forward_train.1} parent=1 // pred_check
      _
    $region11: #{moco_forward_train.1} parent=1 // pred_check_branch
      %31 = sbr.rel (0) target = $region13
    $region12: #{moco_forward_train.1} parent=1 // pred_region
      _
    $region13: #{moco_forward_train.1} parent=1 // pred_fallthru
      _
    // Predicated region
    $region14: #{moco_forward_train.1} parent=1 // pred_check
      _
    $region15: #{moco_forward_train.1} parent=1 // pred_check_branch
      %33 = sbr.rel (0) target = $region17
    $region16: #{moco_forward_train.1} parent=1 // pred_region
      _
    $region17: #{moco_forward_train.1} parent=1 // pred_fallthru
      _
    // Predicated region
    $region18: #{moco_forward_train.1} parent=1 // pred_check
      _
    $region19: #{moco_forward_train.1} parent=1 // pred_check_branch
      %35 = sbr.rel (0) target = $region21
    $region20: #{moco_forward_train.1} parent=1 // pred_region
      _
    $region21: #{moco_forward_train.1} parent=1 // pred_fallthru
      _
    // Predicated region
    $region22: #{moco_forward_train.1} parent=1 // pred_check
      _
    $region23: #{moco_forward_train.1} parent=1 // pred_check_branch
      %37 = sbr.rel (0) target = $region25
    $region24: #{moco_forward_train.1} parent=1 // pred_region
      _
    $region25: #{moco_forward_train.1} parent=1 // pred_fallthru
      _
    // Predicated region
    $region26: #{moco_forward_train.1} parent=1 // pred_check
      _
    $region27: #{moco_forward_train.1} parent=1 // pred_check_branch
      %39 = sbr.rel (0) target = $region29
    $region28: #{moco_forward_train.1} parent=1 // pred_region
      _
    $region29: #{moco_forward_train.1} parent=1 // pred_fallthru
      _
    // Predicated region
    $region30: #{moco_forward_train.1} parent=1 // pred_check
      _
    $region31: #{moco_forward_train.1} parent=1 // pred_check_branch
      %41 = sbr.rel (0) target = $region33
    $region32: #{moco_forward_train.1} parent=1 // pred_region
      _
    $region33: #{moco_forward_train.1} parent=1 // pred_fallthru
      _
    // Predicated region
    $region34: #{moco_forward_train.1} parent=1 // pred_check
      _
    $region35: #{moco_forward_train.1} parent=1 // pred_check_branch
      %43 = sbr.rel (0) target = $region37
    $region36: #{moco_forward_train.1} parent=1 // pred_region
      _
    $region37: #{moco_forward_train.1} parent=1 // pred_fallthru
      _
    // Predicated region
    $region38: #{moco_forward_train.1} parent=1 // pred_check
      _
    $region39: #{moco_forward_train.1} parent=1 // pred_check_branch
      %45 = sbr.rel (0) target = $region41
    $region40: #{moco_forward_train.1} parent=1 // pred_region
      _
    $region41: #{moco_forward_train.1} parent=1 // pred_fallthru
      _
    %p47 = scmp.lt.u32.totalorder 256, 8
    %p48 = pneg %p47
    // Predicated region
    $region42: #{moco_forward_train.1} parent=1 // pred_check
      _
    $region43: #{moco_forward_train.1} parent=1 // pred_check_branch
      %50 = sbr.rel (%p47) target = $region45
    $region44: #{moco_forward_train.1} parent=1 // pred_region
      %s65 = sand.u32 256, 7
      %p66 = scmp.eq.s32.totalorder %s65, 0
      // Predicated region
      $region57: #{moco_forward_train.1} parent=44 // pred_check
        %p67 = pneg %p66
      $region58: #{moco_forward_train.1} parent=44 // pred_check_branch
        %69 = sbr.rel (%p67) target = $region60
      $region59: #{moco_forward_train.1} parent=44 // pred_region
        loop: start=0, step=1, limit=1
        $region61: #{moco_forward_train.1} parent=59 // loop_pre_header
          _
        $region62: #{moco_forward_train.1} parent=59 // loop_header
          %s71 = sphi 0, %s75
          %p72 = scmp.ge.s32.totalorder %s71, 1
          %s76 = sphi %s9, %s9
          %s77 = sphi [#allocation2], [#allocation2]
        $region63: #{moco_forward_train.1} parent=59 // loop_header_branch
          %74 = sbr.rel (%p72) target = $region67
        $region64: #{moco_forward_train.1} parent=59 // loop_body
          %v78 = vld [vmem:[%s76] sm:$0xff]
          %79 = vst [vmem:[%s77] sm:$0xff] %v78
          %v80 = vld [vmem:[%s76 + $0x8] sm:$0xff]
          %81 = vst [vmem:[%s77 + $0x8] sm:$0xff] %v80
          %v82 = vld [vmem:[%s76 + $0x10] sm:$0xff]
          %83 = vst [vmem:[%s77 + $0x10] sm:$0xff] %v82
          %v84 = vld [vmem:[%s76 + $0x18] sm:$0xff]
          %85 = vst [vmem:[%s77 + $0x18] sm:$0xff] %v84
          %v86 = vld [vmem:[%s76 + $0x20] sm:$0xff]
          %87 = vst [vmem:[%s77 + $0x20] sm:$0xff] %v86
          %v88 = vld [vmem:[%s76 + $0x28] sm:$0xff]
          %89 = vst [vmem:[%s77 + $0x28] sm:$0xff] %v88
          %v90 = vld [vmem:[%s76 + $0x30] sm:$0xff]
          %91 = vst [vmem:[%s77 + $0x30] sm:$0xff] %v90
          %v92 = vld [vmem:[%s76 + $0x38] sm:$0xff]
          %93 = vst [vmem:[%s77 + $0x38] sm:$0xff] %v92
          %v94 = vld [vmem:[%s76 + $0x40] sm:$0xff]
          %95 = vst [vmem:[%s77 + $0x40] sm:$0xff] %v94
          %v96 = vld [vmem:[%s76 + $0x48] sm:$0xff]
          %97 = vst [vmem:[%s77 + $0x48] sm:$0xff] %v96
          %v98 = vld [vmem:[%s76 + $0x50] sm:$0xff]
          %99 = vst [vmem:[%s77 + $0x50] sm:$0xff] %v98
          %v100 = vld [vmem:[%s76 + $0x58] sm:$0xff]
          %101 = vst [vmem:[%s77 + $0x58] sm:$0xff] %v100
          %v102 = vld [vmem:[%s76 + $0x60] sm:$0xff]
          %103 = vst [vmem:[%s77 + $0x60] sm:$0xff] %v102
          %v104 = vld [vmem:[%s76 + $0x68] sm:$0xff]
          %105 = vst [vmem:[%s77 + $0x68] sm:$0xff] %v104
          %v106 = vld [vmem:[%s76 + $0x70] sm:$0xff]
          %107 = vst [vmem:[%s77 + $0x70] sm:$0xff] %v106
          %v108 = vld [vmem:[%s76 + $0x78] sm:$0xff]
          %109 = vst [vmem:[%s77 + $0x78] sm:$0xff] %v108
          %v110 = vld [vmem:[%s76 + $0x80] sm:$0xff]
          %111 = vst [vmem:[%s77 + $0x80] sm:$0xff] %v110
          %v112 = vld [vmem:[%s76 + $0x88] sm:$0xff]
          %113 = vst [vmem:[%s77 + $0x88] sm:$0xff] %v112
          %v114 = vld [vmem:[%s76 + $0x90] sm:$0xff]
          %115 = vst [vmem:[%s77 + $0x90] sm:$0xff] %v114
          %v116 = vld [vmem:[%s76 + $0x98] sm:$0xff]
          %117 = vst [vmem:[%s77 + $0x98] sm:$0xff] %v116
          %v118 = vld [vmem:[%s76 + $0xa0] sm:$0xff]
          %119 = vst [vmem:[%s77 + $0xa0] sm:$0xff] %v118
          %v120 = vld [vmem:[%s76 + $0xa8] sm:$0xff]
          %121 = vst [vmem:[%s77 + $0xa8] sm:$0xff] %v120
          %v122 = vld [vmem:[%s76 + $0xb0] sm:$0xff]
          %123 = vst [vmem:[%s77 + $0xb0] sm:$0xff] %v122
          %v124 = vld [vmem:[%s76 + $0xb8] sm:$0xff]
          %125 = vst [vmem:[%s77 + $0xb8] sm:$0xff] %v124
          %v126 = vld [vmem:[%s76 + $0xc0] sm:$0xff]
          %127 = vst [vmem:[%s77 + $0xc0] sm:$0xff] %v126
          %v128 = vld [vmem:[%s76 + $0xc8] sm:$0xff]
          %129 = vst [vmem:[%s77 + $0xc8] sm:$0xff] %v128
          %v130 = vld [vmem:[%s76 + $0xd0] sm:$0xff]
          %131 = vst [vmem:[%s77 + $0xd0] sm:$0xff] %v130
          %v132 = vld [vmem:[%s76 + $0xd8] sm:$0xff]
          %133 = vst [vmem:[%s77 + $0xd8] sm:$0xff] %v132
          %v134 = vld [vmem:[%s76 + $0xe0] sm:$0xff]
          %135 = vst [vmem:[%s77 + $0xe0] sm:$0xff] %v134
          %v136 = vld [vmem:[%s76 + $0xe8] sm:$0xff]
          %137 = vst [vmem:[%s77 + $0xe8] sm:$0xff] %v136
          %v138 = vld [vmem:[%s76 + $0xf0] sm:$0xff]
          %139 = vst [vmem:[%s77 + $0xf0] sm:$0xff] %v138
          %v140 = vld [vmem:[%s76 + $0xf8] sm:$0xff]
          %141 = vst [vmem:[%s77 + $0xf8] sm:$0xff] %v140
        $region65: #{moco_forward_train.1} parent=59 // loop_footer
          %s75 = sadd.s32 1, %s71
        $region66: #{moco_forward_train.1} parent=59 // loop_footer_branch
          %70 = sbr.rel target = $region62
        $region67: #{moco_forward_train.1} parent=59 // loop_exit
          _
      $region60: #{moco_forward_train.1} parent=44 // pred_fallthru
        _
      %p142 = pneg %p66
      // Predicated region
      $region68: #{moco_forward_train.1} parent=44 // pred_check
        _
      $region69: #{moco_forward_train.1} parent=44 // pred_check_branch
        %144 = sbr.rel (%p66) target = $region71
      $region70: #{moco_forward_train.1} parent=44 // pred_region
        %s145 = sand.u32 256, 7
      $region71: #{moco_forward_train.1} parent=44 // pred_fallthru
        _
    $region45: #{moco_forward_train.1} parent=1 // pred_fallthru
      _
    // Predicated region
    $region46: #{moco_forward_train.1} parent=1 // pred_check
      %p51 = pneg %p47
    $region47: #{moco_forward_train.1} parent=1 // pred_check_branch
      %53 = sbr.rel (%p51) target = $region49
    $region48: #{moco_forward_train.1} parent=1 // pred_region
      %s54 = sshllo.u32 0, 256
      loop: start=0, step=1, limit=1
      $region50: #{moco_forward_train.1} parent=48 // loop_pre_header
        _
      $region51: #{moco_forward_train.1} parent=48 // loop_header
        %s56 = sphi 0, %s60
        %p57 = scmp.ge.s32.totalorder %s56, 1
        %s61 = sphi %s9, %s9
        %s62 = sphi [#allocation2], [#allocation2]
      $region52: #{moco_forward_train.1} parent=48 // loop_header_branch
        %59 = sbr.rel (%p57) target = $region56
      $region53: #{moco_forward_train.1} parent=48 // loop_body
        %v63 = vld [vmem:[%s61] sm:%s54]
        %64 = vst [vmem:[%s62] sm:%s54] %v63
      $region54: #{moco_forward_train.1} parent=48 // loop_footer
        %s60 = sadd.s32 1, %s56
      $region55: #{moco_forward_train.1} parent=48 // loop_footer_branch
        %55 = sbr.rel target = $region51
      $region56: #{moco_forward_train.1} parent=48 // loop_exit
        _
    $region49: #{moco_forward_train.1} parent=1 // pred_fallthru
      _
    // Predicated region
    $region72: #{moco_forward_train.1} parent=1 // pred_check
      _
    $region73: #{moco_forward_train.1} parent=1 // pred_check_branch
      %148 = sbr.rel (0) target = $region75
    $region74: #{moco_forward_train.1} parent=1 // pred_region
      %149 = vsyncadd [#allocation4], 4096
    $region75: #{moco_forward_train.1} parent=1 // pred_fallthru
      _
    %v150 = vld [vmem:[%s5] sm:$0xf]
    %v151 = vmul.f32 %v150, 0.999
    %v152 = vld [vmem:[%s1] sm:$0xf]
    %v153 = vmul.f32 %v152, 0.001
    %v154 = vadd.f32 %v151, %v153
    %v155 = vld [vmem:[%s6] sm:$0xff]
    %v156 = vmul.f32 %v155, 0.999
    %v157 = vld [vmem:[%s2] sm:$0xff]
    %v158 = vmul.f32 %v157, 0.001
    %v159 = vadd.f32 %v156, %v158
    %v160 = vld [vmem:[%s7] sm:$0xff]
    %v161 = vmul.f32 %v160, 0.999
    %v162 = vld [vmem:[%s3] sm:$0xff]
    %v163 = vmul.f32 %v162, 0.001
    %v164 = vadd.f32 %v161, %v163
    %v165 = vld [vmem:[%s8] sm:$0x1]
    %v166 = vmul.f32 %v165, 0.999
    %v167 = vld [vmem:[%s4] sm:$0x1]
    %v168 = vmul.f32 %v167, 0.001
    %v169 = vadd.f32 %v166, %v168
    %vm170 = vcmask 60416
    %171 = vst.msk [vmem:[%s12] sm:$0xf] %vm170, %v154
    %vm172 = vcmask 7168
    %173 = vst.msk [vmem:[%s13] sm:$0xff] %vm172, %v159
    %vm174 = vcmask 261120
    %175 = vst.msk [vmem:[%s14] sm:$0xff] %vm174, %v164
    %vm176 = vcmask 253952
    %177 = vst.msk [vmem:[%s15] sm:$0x1] %vm176, %v169
    %v178 = vld [vmem:[%s0] sm:$0xff]
    %v179 = vld [vmem:[%s0 + $0x8] sm:$0xff]
    %v180 = vld [vmem:[%s0 + $0x10] sm:$0xff]
    %v181 = vld [vmem:[%s0 + $0x18] sm:$0xff]
    %v182 = vld [vmem:[%s1] sm:$0xf]
    %v183 = vld [vmem:[%s2] sm:$0xff]
    %v184 = vld [vmem:[%s3] sm:$0xff]
    %v185 = vld [vmem:[%s4] sm:$0x1]
    %187 = vset.pattern.permute.xlu0 0
    %188 = vperm.xlu0 %187, %v183
    %v189 = vpop.permute.xlu0 %188
    %191 = vxpose.xlu0.b32.start [1/16] %v182, 128
    %192 = vxpose.xlu0.b32.cont [2/16] 0.0, 128
    %193 = vxpose.xlu0.b32.cont [3/16] 0.0, 128
    %194 = vxpose.xlu0.b32.cont [4/16] 0.0, 128
    %195 = vxpose.xlu0.b32.cont [5/16] 0.0, 128
    %196 = vxpose.xlu0.b32.cont [6/16] 0.0, 128
    %197 = vxpose.xlu0.b32.cont [7/16] 0.0, 128
    %198 = vxpose.xlu0.b32.cont [8/16] 0.0, 128
    %199 = vxpose.xlu0.b32.cont [9/16] 0.0, 128
    %200 = vxpose.xlu0.b32.cont [10/16] 0.0, 128
    %201 = vxpose.xlu0.b32.cont [11/16] 0.0, 128
    %202 = vxpose.xlu0.b32.cont [12/16] 0.0, 128
    %203 = vxpose.xlu0.b32.cont [13/16] 0.0, 128
    %204 = vxpose.xlu0.b32.cont [14/16] 0.0, 128
    %205 = vxpose.xlu0.b32.cont [15/16] 0.0, 128
    %206 = vxpose.xlu0.b32.end [16/16] 0.0, 128
    %v207 = vpop.trf.xlu0
    %v208 = vpop.trf.xlu0
    %v209 = vpop.trf.xlu0
    %v210 = vpop.trf.xlu0
    %v211 = vpop.trf.xlu0
    %v212 = vpop.trf.xlu0
    %v213 = vpop.trf.xlu0
    %v214 = vpop.trf.xlu0
    %v215 = vpop.trf.xlu0
    %v216 = vpop.trf.xlu0
    %v217 = vpop.trf.xlu0
    %v218 = vpop.trf.xlu0
    %v219 = vpop.trf.xlu0
    %v220 = vpop.trf.xlu0
    %v221 = vpop.trf.xlu0
    %v222 = vpop.trf.xlu0
    %v224 = vcombine.high %v178, %v178
    %vm225 = vcmask 31744
    %v227 = vsel %vm225, %v207, 0
    %vm229 = vcmask 1043456
    %v230 = vsel %vm229, %v178, 0
    %v232 = vsel %vm229, %v224, 0
    %234 = vmatprep.subr.mxu0 %v232
    %235 = vmatpush1.msra.mxu0 %v230
    %236 = vmatprep.subr.mxu0 0.0
    %237 = vmatpush1.msra.mxu0 0.0
    %238 = vmatprep.subr.mxu0 0.0
    %239 = vmatpush1.msra.mxu0 0.0
    %240 = vmatprep.subr.mxu0 0.0
    %241 = vmatpush1.msra.mxu0 0.0
    %242 = vmatprep.subr.mxu0 0.0
    %243 = vmatpush1.msra.mxu0 0.0
    %244 = vmatprep.subr.mxu0 0.0
    %245 = vmatpush1.msra.mxu0 0.0
    %246 = vmatprep.subr.mxu0 0.0
    %247 = vmatpush1.msra.mxu0 0.0
    %248 = vmatprep.subr.mxu0 0.0
    %249 = vmatpush1.msra.mxu0 0.0
    %250 = vmatprep.subr.mxu0 0.0
    %251 = vmatpush1.msra.mxu0 0.0
    %252 = vmatprep.subr.mxu0 0.0
    %253 = vmatpush1.msra.mxu0 0.0
    %254 = vmatprep.subr.mxu0 0.0
    %255 = vmatpush1.msra.mxu0 0.0
    %256 = vmatprep.subr.mxu0 0.0
    %257 = vmatpush1.msra.mxu0 0.0
    %258 = vmatprep.subr.mxu0 0.0
    %259 = vmatpush1.msra.mxu0 0.0
    %260 = vmatprep.subr.mxu0 0.0
    %261 = vmatpush1.msra.mxu0 0.0
    %262 = vmatprep.subr.mxu0 0.0
    %263 = vmatpush1.msra.mxu0 0.0
    %264 = vmatprep.subr.mxu0 0.0
    %265 = vmatpush1.msra.mxu0 0.0
    %266 = vmatprep.subr.mxu0 0.0
    %267 = vmatpush1.msra.mxu0 0.0
    %268 = vmatprep.subr.mxu0 0.0
    %269 = vmatpush1.msra.mxu0 0.0
    %270 = vmatprep.subr.mxu0 0.0
    %271 = vmatpush1.msra.mxu0 0.0
    %272 = vmatprep.subr.mxu0 0.0
    %273 = vmatpush1.msra.mxu0 0.0
    %274 = vmatprep.subr.mxu0 0.0
    %275 = vmatpush1.msra.mxu0 0.0
    %276 = vmatprep.subr.mxu0 0.0
    %277 = vmatpush1.msra.mxu0 0.0
    %278 = vmatprep.subr.mxu0 0.0
    %279 = vmatpush1.msra.mxu0 0.0
    %280 = vmatprep.subr.mxu0 0.0
    %281 = vmatpush1.msra.mxu0 0.0
    %282 = vmatprep.subr.mxu0 0.0
    %283 = vmatpush1.msra.mxu0 0.0
    %284 = vmatprep.subr.mxu0 0.0
    %285 = vmatpush1.msra.mxu0 0.0
    %286 = vmatprep.subr.mxu0 0.0
    %287 = vmatpush1.msra.mxu0 0.0
    %288 = vmatprep.subr.mxu0 0.0
    %289 = vmatpush1.msra.mxu0 0.0
    %290 = vmatprep.subr.mxu0 0.0
    %291 = vmatpush1.msra.mxu0 0.0
    %292 = vmatprep.subr.mxu0 0.0
    %293 = vmatpush1.msra.mxu0 0.0
    %294 = vmatprep.subr.mxu0 0.0
    %295 = vmatpush1.msra.mxu0 0.0
    %296 = vmatprep.subr.mxu0 0.0
    %297 = vmatpush1.msra.mxu0 0.0
    %298 = vmatprep.mubr.f32.mxu0 0.0
    %299 = vmatmul.mubr.f32.gmra.mrb[0].mxu0 %v227
    %v300 = vpop.f32.mrb[0].mxu0
    %v301 = vadd.f32 %v189, %v300
    %v302 = vpop.f32.mrb[0].mxu0
    %v303 = vadd.f32 %v189, %v302
    %304 = vdwg.mxu0
    %v305 = vmax.f32 %v301, 0.0
    %v306 = vmax.f32 %v303, 0.0
    %v307 = vadd.f32 %v305, %v306
    %308 = vadd.xlane.f32.xlu0 %v307
    %v309 = vpop.xlane.xlu0 %308
    %v310 = vrcp.pop 256.0
    %v311 = vmul.f32 %v309, %v310
    %v313 = vcombine.high %v180, %v180
    %v314 = vsel %vm229, %v180, 0
    %v316 = vsel %vm229, %v313, 0
    %318 = vmatprep.subr.mxu0 %v316
    %319 = vmatpush1.msra.mxu0 %v314
    %320 = vmatprep.subr.mxu0 0.0
    %321 = vmatpush1.msra.mxu0 0.0
    %322 = vmatprep.subr.mxu0 0.0
    %323 = vmatpush1.msra.mxu0 0.0
    %324 = vmatprep.subr.mxu0 0.0
    %325 = vmatpush1.msra.mxu0 0.0
    %326 = vmatprep.subr.mxu0 0.0
    %327 = vmatpush1.msra.mxu0 0.0
    %328 = vmatprep.subr.mxu0 0.0
    %329 = vmatpush1.msra.mxu0 0.0
    %330 = vmatprep.subr.mxu0 0.0
    %331 = vmatpush1.msra.mxu0 0.0
    %332 = vmatprep.subr.mxu0 0.0
    %333 = vmatpush1.msra.mxu0 0.0
    %334 = vmatprep.subr.mxu0 0.0
    %335 = vmatpush1.msra.mxu0 0.0
    %336 = vmatprep.subr.mxu0 0.0
    %337 = vmatpush1.msra.mxu0 0.0
    %338 = vmatprep.subr.mxu0 0.0
    %339 = vmatpush1.msra.mxu0 0.0
    %340 = vmatprep.subr.mxu0 0.0
    %341 = vmatpush1.msra.mxu0 0.0
    %342 = vmatprep.subr.mxu0 0.0
    %343 = vmatpush1.msra.mxu0 0.0
    %344 = vmatprep.subr.mxu0 0.0
    %345 = vmatpush1.msra.mxu0 0.0
    %346 = vmatprep.subr.mxu0 0.0
    %347 = vmatpush1.msra.mxu0 0.0
    %348 = vmatprep.subr.mxu0 0.0
    %349 = vmatpush1.msra.mxu0 0.0
    %350 = vmatprep.subr.mxu0 0.0
    %351 = vmatpush1.msra.mxu0 0.0
    %352 = vmatprep.subr.mxu0 0.0
    %353 = vmatpush1.msra.mxu0 0.0
    %354 = vmatprep.subr.mxu0 0.0
    %355 = vmatpush1.msra.mxu0 0.0
    %356 = vmatprep.subr.mxu0 0.0
    %357 = vmatpush1.msra.mxu0 0.0
    %358 = vmatprep.subr.mxu0 0.0
    %359 = vmatpush1.msra.mxu0 0.0
    %360 = vmatprep.subr.mxu0 0.0
    %361 = vmatpush1.msra.mxu0 0.0
    %362 = vmatprep.subr.mxu0 0.0
    %363 = vmatpush1.msra.mxu0 0.0
    %364 = vmatprep.subr.mxu0 0.0
    %365 = vmatpush1.msra.mxu0 0.0
    %366 = vmatprep.subr.mxu0 0.0
    %367 = vmatpush1.msra.mxu0 0.0
    %368 = vmatprep.subr.mxu0 0.0
    %369 = vmatpush1.msra.mxu0 0.0
    %370 = vmatprep.subr.mxu0 0.0
    %371 = vmatpush1.msra.mxu0 0.0
    %372 = vmatprep.subr.mxu0 0.0
    %373 = vmatpush1.msra.mxu0 0.0
    %374 = vmatprep.subr.mxu0 0.0
    %375 = vmatpush1.msra.mxu0 0.0
    %376 = vmatprep.subr.mxu0 0.0
    %377 = vmatpush1.msra.mxu0 0.0
    %378 = vmatprep.subr.mxu0 0.0
    %379 = vmatpush1.msra.mxu0 0.0
    %380 = vmatprep.subr.mxu0 0.0
    %381 = vmatpush1.msra.mxu0 0.0
    %382 = vmatprep.mubr.f32.mxu0 0.0
    %383 = vmatmul.mubr.f32.gmra.mrb[0].mxu0 %v227
    %v384 = vpop.f32.mrb[0].mxu0
    %v385 = vadd.f32 %v189, %v384
    %v386 = vpop.f32.mrb[0].mxu0
    %v387 = vadd.f32 %v189, %v386
    %388 = vdwg.mxu0
    %v389 = vmax.f32 %v385, 0.0
    %v390 = vmax.f32 %v387, 0.0
    %v391 = vadd.f32 %v389, %v390
    %392 = vadd.xlane.f32.xlu0 %v391
    %v393 = vpop.xlane.xlu0 %392
    %v394 = vmul.f32 %v393, %v310
    %v395 = vsel %vm172, %v311, %v394
    %v397 = vlaneseq
    %v398 = vshrl.u32 %v397, 7
    %v399 = vsub.s32 0, %v398
    %v400 = vrot.slane %v185, %v399
    %402 = vxpose.xlu0.b32.start [1/16] %v395, 128
    %403 = vxpose.xlu0.b32.cont [2/16] 0.0, 128
    %404 = vxpose.xlu0.b32.cont [3/16] 0.0, 128
    %405 = vxpose.xlu0.b32.cont [4/16] 0.0, 128
    %406 = vxpose.xlu0.b32.cont [5/16] 0.0, 128
    %407 = vxpose.xlu0.b32.cont [6/16] 0.0, 128
    %408 = vxpose.xlu0.b32.cont [7/16] 0.0, 128
    %409 = vxpose.xlu0.b32.cont [8/16] 0.0, 128
    %410 = vxpose.xlu0.b32.cont [9/16] 0.0, 128
    %411 = vxpose.xlu0.b32.cont [10/16] 0.0, 128
    %412 = vxpose.xlu0.b32.cont [11/16] 0.0, 128
    %413 = vxpose.xlu0.b32.cont [12/16] 0.0, 128
    %414 = vxpose.xlu0.b32.cont [13/16] 0.0, 128
    %415 = vxpose.xlu0.b32.cont [14/16] 0.0, 128
    %416 = vxpose.xlu0.b32.cont [15/16] 0.0, 128
    %417 = vxpose.xlu0.b32.end [16/16] 0.0, 128
    %v418 = vpop.trf.xlu0
    %v419 = vpop.trf.xlu0
    %v420 = vpop.trf.xlu0
    %v421 = vpop.trf.xlu0
    %v422 = vpop.trf.xlu0
    %v423 = vpop.trf.xlu0
    %v424 = vpop.trf.xlu0
    %v425 = vpop.trf.xlu0
    %v426 = vpop.trf.xlu0
    %v427 = vpop.trf.xlu0
    %v428 = vpop.trf.xlu0
    %v429 = vpop.trf.xlu0
    %v430 = vpop.trf.xlu0
    %v431 = vpop.trf.xlu0
    %v432 = vpop.trf.xlu0
    %v433 = vpop.trf.xlu0
    %vm434 = vcmask 64512
    %v436 = vsel %vm434, %v418, 0
    %438 = vmatprep.subr.mxu0 0.0
    %439 = vmatpush1.msra.mxu0 %v184
    %440 = vmatprep.subr.mxu0 0.0
    %441 = vmatpush1.msra.mxu0 0.0
    %442 = vmatprep.subr.mxu0 0.0
    %443 = vmatpush1.msra.mxu0 0.0
    %444 = vmatprep.subr.mxu0 0.0
    %445 = vmatpush1.msra.mxu0 0.0
    %446 = vmatprep.subr.mxu0 0.0
    %447 = vmatpush1.msra.mxu0 0.0
    %448 = vmatprep.subr.mxu0 0.0
    %449 = vmatpush1.msra.mxu0 0.0
    %450 = vmatprep.subr.mxu0 0.0
    %451 = vmatpush1.msra.mxu0 0.0
    %452 = vmatprep.subr.mxu0 0.0
    %453 = vmatpush1.msra.mxu0 0.0
    %454 = vmatprep.subr.mxu0 0.0
    %455 = vmatpush1.msra.mxu0 0.0
    %456 = vmatprep.subr.mxu0 0.0
    %457 = vmatpush1.msra.mxu0 0.0
    %458 = vmatprep.subr.mxu0 0.0
    %459 = vmatpush1.msra.mxu0 0.0
    %460 = vmatprep.subr.mxu0 0.0
    %461 = vmatpush1.msra.mxu0 0.0
    %462 = vmatprep.subr.mxu0 0.0
    %463 = vmatpush1.msra.mxu0 0.0
    %464 = vmatprep.subr.mxu0 0.0
    %465 = vmatpush1.msra.mxu0 0.0
    %466 = vmatprep.subr.mxu0 0.0
    %467 = vmatpush1.msra.mxu0 0.0
    %468 = vmatprep.subr.mxu0 0.0
    %469 = vmatpush1.msra.mxu0 0.0
    %470 = vmatprep.subr.mxu0 0.0
    %471 = vmatpush1.msra.mxu0 0.0
    %472 = vmatprep.subr.mxu0 0.0
    %473 = vmatpush1.msra.mxu0 0.0
    %474 = vmatprep.subr.mxu0 0.0
    %475 = vmatpush1.msra.mxu0 0.0
    %476 = vmatprep.subr.mxu0 0.0
    %477 = vmatpush1.msra.mxu0 0.0
    %478 = vmatprep.subr.mxu0 0.0
    %479 = vmatpush1.msra.mxu0 0.0
    %480 = vmatprep.subr.mxu0 0.0
    %481 = vmatpush1.msra.mxu0 0.0
    %482 = vmatprep.subr.mxu0 0.0
    %483 = vmatpush1.msra.mxu0 0.0
    %484 = vmatprep.subr.mxu0 0.0
    %485 = vmatpush1.msra.mxu0 0.0
    %486 = vmatprep.subr.mxu0 0.0
    %487 = vmatpush1.msra.mxu0 0.0
    %488 = vmatprep.subr.mxu0 0.0
    %489 = vmatpush1.msra.mxu0 0.0
    %490 = vmatprep.subr.mxu0 0.0
    %491 = vmatpush1.msra.mxu0 0.0
    %492 = vmatprep.subr.mxu0 0.0
    %493 = vmatpush1.msra.mxu0 0.0
    %494 = vmatprep.subr.mxu0 0.0
    %495 = vmatpush1.msra.mxu0 0.0
    %496 = vmatprep.subr.mxu0 0.0
    %497 = vmatpush1.msra.mxu0 0.0
    %498 = vmatprep.subr.mxu0 0.0
    %499 = vmatpush1.msra.mxu0 0.0
    %500 = vmatprep.subr.mxu0 0.0
    %501 = vmatpush1.msra.mxu0 0.0
    %502 = vmatprep.mubr.f32.mxu0 0.0
    %503 = vmatmul.mubr.f32.gmra.mrb[0].mxu0 %v436
    %v504 = vpop.f32.mrb[0].mxu0
    %v505 = vadd.f32 %v400, %v504
    %v506 = vpop.f32.mrb[0].mxu0
    %507 = vdwg.mxu0
    %v508 = vmul.f32 %v505, %v505
    %vm509 = vcmask 254976
    %v510 = vsel %vm509, %v508, 0.0
    %511 = vadd.xlane.f32.xlu0 %v510
    %v512 = vpop.xlane.xlu0 %511
    %v513 = vmax.f32 %v512, 1e-24
    %v514 = vrsqrt.pop %v513
    %v515 = vmul.f32 %v505, %v514
    %517 = vset.pattern.permute.xlu0 0
    %518 = vperm.xlu0 %517, %v159
    %v519 = vpop.permute.xlu0 %518
    %521 = vxpose.xlu0.b32.start [1/16] %v154, 128
    %522 = vxpose.xlu0.b32.cont [2/16] 0.0, 128
    %523 = vxpose.xlu0.b32.cont [3/16] 0.0, 128
    %524 = vxpose.xlu0.b32.cont [4/16] 0.0, 128
    %525 = vxpose.xlu0.b32.cont [5/16] 0.0, 128
    %526 = vxpose.xlu0.b32.cont [6/16] 0.0, 128
    %527 = vxpose.xlu0.b32.cont [7/16] 0.0, 128
    %528 = vxpose.xlu0.b32.cont [8/16] 0.0, 128
    %529 = vxpose.xlu0.b32.cont [9/16] 0.0, 128
    %530 = vxpose.xlu0.b32.cont [10/16] 0.0, 128
    %531 = vxpose.xlu0.b32.cont [11/16] 0.0, 128
    %532 = vxpose.xlu0.b32.cont [12/16] 0.0, 128
    %533 = vxpose.xlu0.b32.cont [13/16] 0.0, 128
    %534 = vxpose.xlu0.b32.cont [14/16] 0.0, 128
    %535 = vxpose.xlu0.b32.cont [15/16] 0.0, 128
    %536 = vxpose.xlu0.b32.end [16/16] 0.0, 128
    %v537 = vpop.trf.xlu0
    %v538 = vpop.trf.xlu0
    %v539 = vpop.trf.xlu0
    %v540 = vpop.trf.xlu0
    %v541 = vpop.trf.xlu0
    %v542 = vpop.trf.xlu0
    %v543 = vpop.trf.xlu0
    %v544 = vpop.trf.xlu0
    %v545 = vpop.trf.xlu0
    %v546 = vpop.trf.xlu0
    %v547 = vpop.trf.xlu0
    %v548 = vpop.trf.xlu0
    %v549 = vpop.trf.xlu0
    %v550 = vpop.trf.xlu0
    %v551 = vpop.trf.xlu0
    %v552 = vpop.trf.xlu0
    %v554 = vcombine.high %v179, %v179
    %v556 = vsel %vm225, %v537, 0
    %v558 = vsel %vm229, %v179, 0
    %v560 = vsel %vm229, %v554, 0
    %562 = vmatprep.subr.mxu0 %v560
    %563 = vmatpush1.msra.mxu0 %v558
    %564 = vmatprep.subr.mxu0 0.0
    %565 = vmatpush1.msra.mxu0 0.0
    %566 = vmatprep.subr.mxu0 0.0
    %567 = vmatpush1.msra.mxu0 0.0
    %568 = vmatprep.subr.mxu0 0.0
    %569 = vmatpush1.msra.mxu0 0.0
    %570 = vmatprep.subr.mxu0 0.0
    %571 = vmatpush1.msra.mxu0 0.0
    %572 = vmatprep.subr.mxu0 0.0
    %573 = vmatpush1.msra.mxu0 0.0
    %574 = vmatprep.subr.mxu0 0.0
    %575 = vmatpush1.msra.mxu0 0.0
    %576 = vmatprep.subr.mxu0 0.0
    %577 = vmatpush1.msra.mxu0 0.0
    %578 = vmatprep.subr.mxu0 0.0
    %579 = vmatpush1.msra.mxu0 0.0
    %580 = vmatprep.subr.mxu0 0.0
    %581 = vmatpush1.msra.mxu0 0.0
    %582 = vmatprep.subr.mxu0 0.0
    %583 = vmatpush1.msra.mxu0 0.0
    %584 = vmatprep.subr.mxu0 0.0
    %585 = vmatpush1.msra.mxu0 0.0
    %586 = vmatprep.subr.mxu0 0.0
    %587 = vmatpush1.msra.mxu0 0.0
    %588 = vmatprep.subr.mxu0 0.0
    %589 = vmatpush1.msra.mxu0 0.0
    %590 = vmatprep.subr.mxu0 0.0
    %591 = vmatpush1.msra.mxu0 0.0
    %592 = vmatprep.subr.mxu0 0.0
    %593 = vmatpush1.msra.mxu0 0.0
    %594 = vmatprep.subr.mxu0 0.0
    %595 = vmatpush1.msra.mxu0 0.0
    %596 = vmatprep.subr.mxu0 0.0
    %597 = vmatpush1.msra.mxu0 0.0
    %598 = vmatprep.subr.mxu0 0.0
    %599 = vmatpush1.msra.mxu0 0.0
    %600 = vmatprep.subr.mxu0 0.0
    %601 = vmatpush1.msra.mxu0 0.0
    %602 = vmatprep.subr.mxu0 0.0
    %603 = vmatpush1.msra.mxu0 0.0
    %604 = vmatprep.subr.mxu0 0.0
    %605 = vmatpush1.msra.mxu0 0.0
    %606 = vmatprep.subr.mxu0 0.0
    %607 = vmatpush1.msra.mxu0 0.0
    %608 = vmatprep.subr.mxu0 0.0
    %609 = vmatpush1.msra.mxu0 0.0
    %610 = vmatprep.subr.mxu0 0.0
    %611 = vmatpush1.msra.mxu0 0.0
    %612 = vmatprep.subr.mxu0 0.0
    %613 = vmatpush1.msra.mxu0 0.0
    %614 = vmatprep.subr.mxu0 0.0
    %615 = vmatpush1.msra.mxu0 0.0
    %616 = vmatprep.subr.mxu0 0.0
    %617 = vmatpush1.msra.mxu0 0.0
    %618 = vmatprep.subr.mxu0 0.0
    %619 = vmatpush1.msra.mxu0 0.0
    %620 = vmatprep.subr.mxu0 0.0
    %621 = vmatpush1.msra.mxu0 0.0
    %622 = vmatprep.subr.mxu0 0.0
    %623 = vmatpush1.msra.mxu0 0.0
    %624 = vmatprep.subr.mxu0 0.0
    %625 = vmatpush1.msra.mxu0 0.0
    %626 = vmatprep.mubr.f32.mxu0 0.0
    %627 = vmatmul.mubr.f32.gmra.mrb[0].mxu0 %v556
    %v628 = vpop.f32.mrb[0].mxu0
    %v629 = vadd.f32 %v519, %v628
    %v630 = vpop.f32.mrb[0].mxu0
    %v631 = vadd.f32 %v519, %v630
    %632 = vdwg.mxu0
    %v633 = vmax.f32 %v629, 0.0
    %v634 = vmax.f32 %v631, 0.0
    %v635 = vadd.f32 %v633, %v634
    %636 = vadd.xlane.f32.xlu0 %v635
    %v637 = vpop.xlane.xlu0 %636
    %v638 = vmul.f32 %v637, %v310
    %v640 = vcombine.high %v181, %v181
    %v641 = vsel %vm229, %v181, 0
    %v643 = vsel %vm229, %v640, 0
    %645 = vmatprep.subr.mxu0 %v643
    %646 = vmatpush1.msra.mxu0 %v641
    %647 = vmatprep.subr.mxu0 0.0
    %648 = vmatpush1.msra.mxu0 0.0
    %649 = vmatprep.subr.mxu0 0.0
    %650 = vmatpush1.msra.mxu0 0.0
    %651 = vmatprep.subr.mxu0 0.0
    %652 = vmatpush1.msra.mxu0 0.0
    %653 = vmatprep.subr.mxu0 0.0
    %654 = vmatpush1.msra.mxu0 0.0
    %655 = vmatprep.subr.mxu0 0.0
    %656 = vmatpush1.msra.mxu0 0.0
    %657 = vmatprep.subr.mxu0 0.0
    %658 = vmatpush1.msra.mxu0 0.0
    %659 = vmatprep.subr.mxu0 0.0
    %660 = vmatpush1.msra.mxu0 0.0
    %661 = vmatprep.subr.mxu0 0.0
    %662 = vmatpush1.msra.mxu0 0.0
    %663 = vmatprep.subr.mxu0 0.0
    %664 = vmatpush1.msra.mxu0 0.0
    %665 = vmatprep.subr.mxu0 0.0
    %666 = vmatpush1.msra.mxu0 0.0
    %667 = vmatprep.subr.mxu0 0.0
    %668 = vmatpush1.msra.mxu0 0.0
    %669 = vmatprep.subr.mxu0 0.0
    %670 = vmatpush1.msra.mxu0 0.0
    %671 = vmatprep.subr.mxu0 0.0
    %672 = vmatpush1.msra.mxu0 0.0
    %673 = vmatprep.subr.mxu0 0.0
    %674 = vmatpush1.msra.mxu0 0.0
    %675 = vmatprep.subr.mxu0 0.0
    %676 = vmatpush1.msra.mxu0 0.0
    %677 = vmatprep.subr.mxu0 0.0
    %678 = vmatpush1.msra.mxu0 0.0
    %679 = vmatprep.subr.mxu0 0.0
    %680 = vmatpush1.msra.mxu0 0.0
    %681 = vmatprep.subr.mxu0 0.0
    %682 = vmatpush1.msra.mxu0 0.0
    %683 = vmatprep.subr.mxu0 0.0
    %684 = vmatpush1.msra.mxu0 0.0
    %685 = vmatprep.subr.mxu0 0.0
    %686 = vmatpush1.msra.mxu0 0.0
    %687 = vmatprep.subr.mxu0 0.0
    %688 = vmatpush1.msra.mxu0 0.0
    %689 = vmatprep.subr.mxu0 0.0
    %690 = vmatpush1.msra.mxu0 0.0
    %691 = vmatprep.subr.mxu0 0.0
    %692 = vmatpush1.msra.mxu0 0.0
    %693 = vmatprep.subr.mxu0 0.0
    %694 = vmatpush1.msra.mxu0 0.0
    %695 = vmatprep.subr.mxu0 0.0
    %696 = vmatpush1.msra.mxu0 0.0
    %697 = vmatprep.subr.mxu0 0.0
    %698 = vmatpush1.msra.mxu0 0.0
    %699 = vmatprep.subr.mxu0 0.0
    %700 = vmatpush1.msra.mxu0 0.0
    %701 = vmatprep.subr.mxu0 0.0
    %702 = vmatpush1.msra.mxu0 0.0
    %703 = vmatprep.subr.mxu0 0.0
    %704 = vmatpush1.msra.mxu0 0.0
    %705 = vmatprep.subr.mxu0 0.0
    %706 = vmatpush1.msra.mxu0 0.0
    %707 = vmatprep.subr.mxu0 0.0
    %708 = vmatpush1.msra.mxu0 0.0
    %709 = vmatprep.mubr.f32.mxu0 0.0
    %710 = vmatmul.mubr.f32.gmra.mrb[0].mxu0 %v556
    %v711 = vpop.f32.mrb[0].mxu0
    %v712 = vadd.f32 %v519, %v711
    %v713 = vpop.f32.mrb[0].mxu0
    %v714 = vadd.f32 %v519, %v713
    %715 = vdwg.mxu0
    %v716 = vmax.f32 %v712, 0.0
    %v717 = vmax.f32 %v714, 0.0
    %v718 = vadd.f32 %v716, %v717
    %719 = vadd.xlane.f32.xlu0 %v718
    %v720 = vpop.xlane.xlu0 %719
    %v721 = vmul.f32 %v720, %v310
    %v722 = vsel %vm172, %v638, %v721
    %v724 = vlaneseq
    %v725 = vshrl.u32 %v724, 7
    %v726 = vsub.s32 0, %v725
    %v727 = vrot.slane %v169, %v726
    %729 = vxpose.xlu0.b32.start [1/16] %v722, 128
    %730 = vxpose.xlu0.b32.cont [2/16] 0.0, 128
    %731 = vxpose.xlu0.b32.cont [3/16] 0.0, 128
    %732 = vxpose.xlu0.b32.cont [4/16] 0.0, 128
    %733 = vxpose.xlu0.b32.cont [5/16] 0.0, 128
    %734 = vxpose.xlu0.b32.cont [6/16] 0.0, 128
    %735 = vxpose.xlu0.b32.cont [7/16] 0.0, 128
    %736 = vxpose.xlu0.b32.cont [8/16] 0.0, 128
    %737 = vxpose.xlu0.b32.cont [9/16] 0.0, 128
    %738 = vxpose.xlu0.b32.cont [10/16] 0.0, 128
    %739 = vxpose.xlu0.b32.cont [11/16] 0.0, 128
    %740 = vxpose.xlu0.b32.cont [12/16] 0.0, 128
    %741 = vxpose.xlu0.b32.cont [13/16] 0.0, 128
    %742 = vxpose.xlu0.b32.cont [14/16] 0.0, 128
    %743 = vxpose.xlu0.b32.cont [15/16] 0.0, 128
    %744 = vxpose.xlu0.b32.end [16/16] 0.0, 128
    %v745 = vpop.trf.xlu0
    %v746 = vpop.trf.xlu0
    %v747 = vpop.trf.xlu0
    %v748 = vpop.trf.xlu0
    %v749 = vpop.trf.xlu0
    %v750 = vpop.trf.xlu0
    %v751 = vpop.trf.xlu0
    %v752 = vpop.trf.xlu0
    %v753 = vpop.trf.xlu0
    %v754 = vpop.trf.xlu0
    %v755 = vpop.trf.xlu0
    %v756 = vpop.trf.xlu0
    %v757 = vpop.trf.xlu0
    %v758 = vpop.trf.xlu0
    %v759 = vpop.trf.xlu0
    %v760 = vpop.trf.xlu0
    %v762 = vsel %vm434, %v745, 0
    %764 = vmatprep.subr.mxu0 0.0
    %765 = vmatpush1.msra.mxu0 %v164
    %766 = vmatprep.subr.mxu0 0.0
    %767 = vmatpush1.msra.mxu0 0.0
    %768 = vmatprep.subr.mxu0 0.0
    %769 = vmatpush1.msra.mxu0 0.0
    %770 = vmatprep.subr.mxu0 0.0
    %771 = vmatpush1.msra.mxu0 0.0
    %772 = vmatprep.subr.mxu0 0.0
    %773 = vmatpush1.msra.mxu0 0.0
    %774 = vmatprep.subr.mxu0 0.0
    %775 = vmatpush1.msra.mxu0 0.0
    %776 = vmatprep.subr.mxu0 0.0
    %777 = vmatpush1.msra.mxu0 0.0
    %778 = vmatprep.subr.mxu0 0.0
    %779 = vmatpush1.msra.mxu0 0.0
    %780 = vmatprep.subr.mxu0 0.0
    %781 = vmatpush1.msra.mxu0 0.0
    %782 = vmatprep.subr.mxu0 0.0
    %783 = vmatpush1.msra.mxu0 0.0
    %784 = vmatprep.subr.mxu0 0.0
    %785 = vmatpush1.msra.mxu0 0.0
    %786 = vmatprep.subr.mxu0 0.0
    %787 = vmatpush1.msra.mxu0 0.0
    %788 = vmatprep.subr.mxu0 0.0
    %789 = vmatpush1.msra.mxu0 0.0
    %790 = vmatprep.subr.mxu0 0.0
    %791 = vmatpush1.msra.mxu0 0.0
    %792 = vmatprep.subr.mxu0 0.0
    %793 = vmatpush1.msra.mxu0 0.0
    %794 = vmatprep.subr.mxu0 0.0
    %795 = vmatpush1.msra.mxu0 0.0
    %796 = vmatprep.subr.mxu0 0.0
    %797 = vmatpush1.msra.mxu0 0.0
    %798 = vmatprep.subr.mxu0 0.0
    %799 = vmatpush1.msra.mxu0 0.0
    %800 = vmatprep.subr.mxu0 0.0
    %801 = vmatpush1.msra.mxu0 0.0
    %802 = vmatprep.subr.mxu0 0.0
    %803 = vmatpush1.msra.mxu0 0.0
    %804 = vmatprep.subr.mxu0 0.0
    %805 = vmatpush1.msra.mxu0 0.0
    %806 = vmatprep.subr.mxu0 0.0
    %807 = vmatpush1.msra.mxu0 0.0
    %808 = vmatprep.subr.mxu0 0.0
    %809 = vmatpush1.msra.mxu0 0.0
    %810 = vmatprep.subr.mxu0 0.0
    %811 = vmatpush1.msra.mxu0 0.0
    %812 = vmatprep.subr.mxu0 0.0
    %813 = vmatpush1.msra.mxu0 0.0
    %814 = vmatprep.subr.mxu0 0.0
    %815 = vmatpush1.msra.mxu0 0.0
    %816 = vmatprep.subr.mxu0 0.0
    %817 = vmatpush1.msra.mxu0 0.0
    %818 = vmatprep.subr.mxu0 0.0
    %819 = vmatpush1.msra.mxu0 0.0
    %820 = vmatprep.subr.mxu0 0.0
    %821 = vmatpush1.msra.mxu0 0.0
    %822 = vmatprep.subr.mxu0 0.0
    %823 = vmatpush1.msra.mxu0 0.0
    %824 = vmatprep.subr.mxu0 0.0
    %825 = vmatpush1.msra.mxu0 0.0
    %826 = vmatprep.subr.mxu0 0.0
    %827 = vmatpush1.msra.mxu0 0.0
    %828 = vmatprep.mubr.f32.mxu0 0.0
    %829 = vmatmul.mubr.f32.gmra.mrb[0].mxu0 %v762
    %v830 = vpop.f32.mrb[0].mxu0
    %v831 = vadd.f32 %v727, %v830
    %v832 = vpop.f32.mrb[0].mxu0
    %833 = vdwg.mxu0
    %v834 = vmul.f32 %v831, %v831
    %v835 = vsel %vm509, %v834, 0.0
    %836 = vadd.xlane.f32.xlu0 %v835
    %v837 = vpop.xlane.xlu0 %836
    %v838 = vmax.f32 %v837, 1e-24
    %v839 = vrsqrt.pop %v838
    %v840 = vmul.f32 %v831, %v839
    %v841 = vmul.f32 %v515, %v840
    %v842 = vsel %vm509, %v841, 0.0
    %843 = vadd.xlane.f32.xlu0 %v842
    %v844 = vpop.xlane.xlu0 %843
    %845 = vst.msk [vmem:[#allocation3] sm:$0x3] %vm509, %v840
    %s846 = smul.u32 256, 1
    %s847 = sshll.u32 %s846, 4
    %848 = dma.done [#allocation4], %s847
    %s849 = sld [smem:[#allocation5]]
    %s850 = scalar_lea.vmem %s16, %s849
    %s851 = scalar_lea.sflag [#allocation4], 1
    %p853 = scmp.lt.u32.totalorder 2, 8
    %p854 = pneg %p853
    // Predicated region
    $region76: #{moco_forward_train.1} parent=1 // pred_check
      _
    $region77: #{moco_forward_train.1} parent=1 // pred_check_branch
      %856 = sbr.rel (%p853) target = $region79
    $region78: #{moco_forward_train.1} parent=1 // pred_region
      %s871 = sand.u32 2, 7
      %p872 = scmp.eq.s32.totalorder %s871, 0
      %p873 = pneg %p872
      // Predicated region
      $region91: #{moco_forward_train.1} parent=78 // pred_check
        _
      $region92: #{moco_forward_train.1} parent=78 // pred_check_branch
        %875 = sbr.rel (%p872) target = $region94
      $region93: #{moco_forward_train.1} parent=78 // pred_region
        %s876 = sand.u32 2, 7
        %s877 = ssub.s32 2, %s876
        %s878 = scalar_lea.vmem [#allocation3], %s877
        %s879 = ssub.s32 2, %s876
        %s880 = scalar_lea.vmem %s850, %s879
        %s881 = sshllo.u32 0, %s876
        loop: start=0, step=1, limit=1
        $region95: #{moco_forward_train.1} parent=93 // loop_pre_header
          _
        $region96: #{moco_forward_train.1} parent=93 // loop_header
          %s883 = sphi 0, %s887
          %p884 = scmp.ge.s32.totalorder %s883, 1
          %s888 = sphi %s878, %s878
          %s889 = sphi %s880, %s880
        $region97: #{moco_forward_train.1} parent=93 // loop_header_branch
          %886 = sbr.rel (%p884) target = $region101
        $region98: #{moco_forward_train.1} parent=93 // loop_body
          %v890 = vld [vmem:[%s888] sm:%s881]
          %891 = vst [vmem:[%s889] sm:%s881] %v890
        $region99: #{moco_forward_train.1} parent=93 // loop_footer
          %s887 = sadd.s32 1, %s883
        $region100: #{moco_forward_train.1} parent=93 // loop_footer_branch
          %882 = sbr.rel target = $region96
        $region101: #{moco_forward_train.1} parent=93 // loop_exit
          _
      $region94: #{moco_forward_train.1} parent=78 // pred_fallthru
        _
    $region79: #{moco_forward_train.1} parent=1 // pred_fallthru
      _
    // Predicated region
    $region80: #{moco_forward_train.1} parent=1 // pred_check
      %p857 = pneg %p853
    $region81: #{moco_forward_train.1} parent=1 // pred_check_branch
      %859 = sbr.rel (%p857) target = $region83
    $region82: #{moco_forward_train.1} parent=1 // pred_region
      %s860 = sshllo.u32 0, 2
      loop: start=0, step=1, limit=1
      $region84: #{moco_forward_train.1} parent=82 // loop_pre_header
        _
      $region85: #{moco_forward_train.1} parent=82 // loop_header
        %s862 = sphi 0, %s866
        %p863 = scmp.ge.s32.totalorder %s862, 1
        %s867 = sphi [#allocation3], [#allocation3]
        %s868 = sphi %s850, %s850
      $region86: #{moco_forward_train.1} parent=82 // loop_header_branch
        %865 = sbr.rel (%p863) target = $region90
      $region87: #{moco_forward_train.1} parent=82 // loop_body
        %v869 = vld [vmem:[%s867] sm:%s860]
        %870 = vst [vmem:[%s868] sm:%s860] %v869
      $region88: #{moco_forward_train.1} parent=82 // loop_footer
        %s866 = sadd.s32 1, %s862
      $region89: #{moco_forward_train.1} parent=82 // loop_footer_branch
        %861 = sbr.rel target = $region85
      $region90: #{moco_forward_train.1} parent=82 // loop_exit
        _
    $region83: #{moco_forward_train.1} parent=1 // pred_fallthru
      _
    // Predicated region
    $region102: #{moco_forward_train.1} parent=1 // pred_check
      _
    $region103: #{moco_forward_train.1} parent=1 // pred_check_branch
      %894 = sbr.rel (0) target = $region105
    $region104: #{moco_forward_train.1} parent=1 // pred_region
      %895 = vsyncadd %s851, 32
    $region105: #{moco_forward_train.1} parent=1 // pred_fallthru
      _
    %v896 = vld [vmem:[#allocation2] sm:$0xff]
    %v897 = vld [vmem:[#allocation2 + $0x8] sm:$0xff]
    %v898 = vld [vmem:[#allocation2 + $0x10] sm:$0xff]
    %v899 = vld [vmem:[#allocation2 + $0x18] sm:$0xff]
    %v900 = vld [vmem:[#allocation2 + $0x20] sm:$0xff]
    %v901 = vld [vmem:[#allocation2 + $0x28] sm:$0xff]
    %v902 = vld [vmem:[#allocation2 + $0x30] sm:$0xff]
    %v903 = vld [vmem:[#allocation2 + $0x38] sm:$0xff]
    %v904 = vld [vmem:[#allocation2 + $0x40] sm:$0xff]
    %v905 = vld [vmem:[#allocation2 + $0x48] sm:$0xff]
    %v906 = vld [vmem:[#allocation2 + $0x50] sm:$0xff]
    %v907 = vld [vmem:[#allocation2 + $0x58] sm:$0xff]
    %v908 = vld [vmem:[#allocation2 + $0x60] sm:$0xff]
    %v909 = vld [vmem:[#allocation2 + $0x68] sm:$0xff]
    %v910 = vld [vmem:[#allocation2 + $0x70] sm:$0xff]
    %v911 = vld [vmem:[#allocation2 + $0x78] sm:$0xff]
    %v912 = vld [vmem:[#allocation2 + $0x80] sm:$0xff]
    %v913 = vld [vmem:[#allocation2 + $0x88] sm:$0xff]
    %v914 = vld [vmem:[#allocation2 + $0x90] sm:$0xff]
    %v915 = vld [vmem:[#allocation2 + $0x98] sm:$0xff]
    %v916 = vld [vmem:[#allocation2 + $0xa0] sm:$0xff]
    %v917 = vld [vmem:[#allocation2 + $0xa8] sm:$0xff]
    %v918 = vld [vmem:[#allocation2 + $0xb0] sm:$0xff]
    %v919 = vld [vmem:[#allocation2 + $0xb8] sm:$0xff]
    %v920 = vld [vmem:[#allocation2 + $0xc0] sm:$0xff]
    %v921 = vld [vmem:[#allocation2 + $0xc8] sm:$0xff]
    %v922 = vld [vmem:[#allocation2 + $0xd0] sm:$0xff]
    %v923 = vld [vmem:[#allocation2 + $0xd8] sm:$0xff]
    %v924 = vld [vmem:[#allocation2 + $0xe0] sm:$0xff]
    %v925 = vld [vmem:[#allocation2 + $0xe8] sm:$0xff]
    %v926 = vld [vmem:[#allocation2 + $0xf0] sm:$0xff]
    %v927 = vld [vmem:[#allocation2 + $0xf8] sm:$0xff]
    %v929 = vsel %vm174, %v515, 0
    %v932 = vsel %vm174, %v896, 0
    %v935 = vsel %vm174, %v897, 0
    %v938 = vsel %vm174, %v898, 0
    %v941 = vsel %vm174, %v899, 0
    %v944 = vsel %vm174, %v900, 0
    %v947 = vsel %vm174, %v901, 0
    %v950 = vsel %vm174, %v902, 0
    %v953 = vsel %vm174, %v903, 0
    %v956 = vsel %vm174, %v904, 0
    %v959 = vsel %vm174, %v905, 0
    %v962 = vsel %vm174, %v906, 0
    %v965 = vsel %vm174, %v907, 0
    %v968 = vsel %vm174, %v908, 0
    %v971 = vsel %vm174, %v909, 0
    %v974 = vsel %vm174, %v910, 0
    %v977 = vsel %vm174, %v911, 0
    %v980 = vsel %vm174, %v912, 0
    %v983 = vsel %vm174, %v913, 0
    %v986 = vsel %vm174, %v914, 0
    %v989 = vsel %vm174, %v915, 0
    %v992 = vsel %vm174, %v916, 0
    %v995 = vsel %vm174, %v917, 0
    %v998 = vsel %vm174, %v918, 0
    %v1001 = vsel %vm174, %v919, 0
    %v1004 = vsel %vm174, %v920, 0
    %v1007 = vsel %vm174, %v921, 0
    %v1010 = vsel %vm174, %v922, 0
    %v1013 = vsel %vm174, %v923, 0
    %v1016 = vsel %vm174, %v924, 0
    %v1019 = vsel %vm174, %v925, 0
    %v1022 = vsel %vm174, %v926, 0
    %v1025 = vsel %vm174, %v927, 0
    %1027 = vmatprep.subr.mxu0 0.0
    %1028 = vmatpush1.xpose.msra.mxu0 %v932
    %1029 = vmatprep.subr.mxu0 0.0
    %1030 = vmatpush1.xpose.msra.mxu0 %v935
    %1031 = vmatprep.subr.mxu0 0.0
    %1032 = vmatpush1.xpose.msra.mxu0 %v938
    %1033 = vmatprep.subr.mxu0 0.0
    %1034 = vmatpush1.xpose.msra.mxu0 %v941
    %1035 = vmatprep.subr.mxu0 0.0
    %1036 = vmatpush1.xpose.msra.mxu0 %v944
    %1037 = vmatprep.subr.mxu0 0.0
    %1038 = vmatpush1.xpose.msra.mxu0 %v947
    %1039 = vmatprep.subr.mxu0 0.0
    %1040 = vmatpush1.xpose.msra.mxu0 %v950
    %1041 = vmatprep.subr.mxu0 0.0
    %1042 = vmatpush1.xpose.msra.mxu0 %v953
    %1043 = vmatprep.subr.mxu0 0.0
    %1044 = vmatpush1.xpose.msra.mxu0 %v956
    %1045 = vmatprep.subr.mxu0 0.0
    %1046 = vmatpush1.xpose.msra.mxu0 %v959
    %1047 = vmatprep.subr.mxu0 0.0
    %1048 = vmatpush1.xpose.msra.mxu0 %v962
    %1049 = vmatprep.subr.mxu0 0.0
    %1050 = vmatpush1.xpose.msra.mxu0 %v965
    %1051 = vmatprep.subr.mxu0 0.0
    %1052 = vmatpush1.xpose.msra.mxu0 %v968
    %1053 = vmatprep.subr.mxu0 0.0
    %1054 = vmatpush1.xpose.msra.mxu0 %v971
    %1055 = vmatprep.subr.mxu0 0.0
    %1056 = vmatpush1.xpose.msra.mxu0 %v974
    %1057 = vmatprep.subr.mxu0 0.0
    %1058 = vmatpush1.xpose.msra.mxu0 %v977
    %1059 = vmatprep.subr.mxu0 0.0
    %1060 = vmatpush1.xpose.msra.mxu0 %v980
    %1061 = vmatprep.subr.mxu0 0.0
    %1062 = vmatpush1.xpose.msra.mxu0 %v983
    %1063 = vmatprep.subr.mxu0 0.0
    %1064 = vmatpush1.xpose.msra.mxu0 %v986
    %1065 = vmatprep.subr.mxu0 0.0
    %1066 = vmatpush1.xpose.msra.mxu0 %v989
    %1067 = vmatprep.subr.mxu0 0.0
    %1068 = vmatpush1.xpose.msra.mxu0 %v992
    %1069 = vmatprep.subr.mxu0 0.0
    %1070 = vmatpush1.xpose.msra.mxu0 %v995
    %1071 = vmatprep.subr.mxu0 0.0
    %1072 = vmatpush1.xpose.msra.mxu0 %v998
    %1073 = vmatprep.subr.mxu0 0.0
    %1074 = vmatpush1.xpose.msra.mxu0 %v1001
    %1075 = vmatprep.subr.mxu0 0.0
    %1076 = vmatpush1.xpose.msra.mxu0 %v1004
    %1077 = vmatprep.subr.mxu0 0.0
    %1078 = vmatpush1.xpose.msra.mxu0 %v1007
    %1079 = vmatprep.subr.mxu0 0.0
    %1080 = vmatpush1.xpose.msra.mxu0 %v1010
    %1081 = vmatprep.subr.mxu0 0.0
    %1082 = vmatpush1.xpose.msra.mxu0 %v1013
    %1083 = vmatprep.subr.mxu0 0.0
    %1084 = vmatpush1.xpose.msra.mxu0 %v1016
    %1085 = vmatprep.subr.mxu0 0.0
    %1086 = vmatpush1.xpose.msra.mxu0 %v1019
    %1087 = vmatprep.subr.mxu0 0.0
    %1088 = vmatpush1.xpose.msra.mxu0 %v1022
    %1089 = vmatprep.subr.mxu0 0.0
    %1090 = vmatpush1.xpose.msra.mxu0 %v1025
    %1091 = vmatprep.mubr.f32.mxu0 0.0
    %1092 = vmatmul.mubr.f32.gmra.mrb[0].mxu0 %v929
    %v1093 = vpop.f32.mrb[0].mxu0
    %v1094 = vadd.f32 0.0, %v1093
    %v1095 = vpop.f32.mrb[0].mxu0
    %v1096 = vadd.f32 0.0, %v1095
    %1097 = vdwg.mxu0
    %v1098 = vmul.f32 %v844, 10.0
    %v1099 = vmul.f32 %v1094, 10.0
    %v1100 = vmul.f32 %v1096, 10.0
    %vm1101 = vcmask 1041408
    %v1102 = vsel %vm1101, %v1099, -inf
    %v1103 = vsel %vm1101, %v1100, -inf
    %v1104 = vmax.f32 %v1102, %v1103
    %1105 = vmax.xlane.f32.xlu0 %v1104
    %v1106 = vpop.xlane.xlu0 %1105
    %v1107 = vmax.f32 %v1098, %v1106
    %v1108 = vsub.f32 %v1098, %v1107
    %v1109 = vmul.f32 %v1108, 1.442695
    %v1110 = vpow.pop %v1109
    %v1111 = vsub.f32 %v1099, %v1107
    %v1112 = vsub.f32 %v1100, %v1107
    %v1113 = vmul.f32 %v1111, 1.442695
    %v1114 = vpow.pop %v1113
    %v1115 = vmul.f32 %v1112, 1.442695
    %v1116 = vpow.pop %v1115
    %v1117 = vsel %vm1101, %v1114, 0.0
    %v1118 = vsel %vm1101, %v1116, 0.0
    %v1119 = vadd.f32 %v1117, %v1118
    %1120 = vadd.xlane.f32.xlu0 %v1119
    %v1121 = vpop.xlane.xlu0 %1120
    %v1122 = vadd.f32 %v1110, %v1121
    %v1123 = vlog2.pop %v1122
    %v1124 = vmul.f32 %v1123, 0.6931472
    %v1125 = vadd.f32 %v1107, %v1124
    %v1126 = vsub.f32 %v1125, %v1098
    %vm1127 = vcmask 1024
    %v1128 = vsel %vm1127, %v1126, 0.0
    %1129 = vadd.xlane.f32.xlu0 %v1128
    %v1130 = vpop.xlane.xlu0 %1129
    %v1131 = vrot.slane %v1130, 4
    %v1132 = vadd.f32 %v1130, %v1131
    %v1133 = vrot.slane %v1132, 2
    %v1134 = vadd.f32 %v1132, %v1133
    %v1135 = vrot.slane %v1134, 1
    %v1136 = vadd.f32 %v1134, %v1135
    %s1137 = vtos %v1136
    %v1138 = vrcp.pop 2.0
    %s1139 = vtos %v1138
    %s1140 = smul.f32 %s1137, %s1139
    %s1141 = scalar_lea.smem [#allocation6], 0
    %1142 = sst [smem:[%s1141]] %s1140
    %s1143 = smul.u32 2, 1
    %s1144 = sshll.u32 %s1143, 4
    %1145 = dma.done %s851, %s1144
    %s1146 = sadd.s32 %s849, 2
    %p1147 = scmp.ge.s32.totalorder %s1146, 256
    %s1148 = sadd.s32 %s849, 4294967042
    %s1149 = scalar_select %p1147, %s1148, %s1146
    %s1150 = scalar_lea.smem [#allocation8], 0
    %1151 = sst [smem:[%s1150]] %s1149
    // Predicated region
    $region106: #{moco_forward_train.1} parent=1 // pred_check
      _
    $region107: #{moco_forward_train.1} parent=1 // pred_check_branch
      %1153 = sbr.rel (0) target = $region109
    $region108: #{moco_forward_train.1} parent=1 // pred_region
      %s1155 = ssub.s32 16, 16
      %1156 = vsyncadd [#allocation7], %s1155
      %1159 = dma.smem_to_hbm [#allocation6], 16, %s11, [#allocation7]
    $region109: #{moco_forward_train.1} parent=1 // pred_fallthru
      _
    // Predicated region
    $region110: #{moco_forward_train.1} parent=1 // pred_check
      _
    $region111: #{moco_forward_train.1} parent=1 // pred_check_branch
      %1161 = sbr.rel (0) target = $region113
    $region112: #{moco_forward_train.1} parent=1 // pred_region
      _
    $region113: #{moco_forward_train.1} parent=1 // pred_fallthru
      _
    // Predicated region
    $region114: #{moco_forward_train.1} parent=1 // pred_check
      _
    $region115: #{moco_forward_train.1} parent=1 // pred_check_branch
      %1163 = sbr.rel (0) target = $region117
    $region116: #{moco_forward_train.1} parent=1 // pred_region
      _
    $region117: #{moco_forward_train.1} parent=1 // pred_fallthru
      _
    // Predicated region
    $region118: #{moco_forward_train.1} parent=1 // pred_check
      _
    $region119: #{moco_forward_train.1} parent=1 // pred_check_branch
      %1165 = sbr.rel (0) target = $region121
    $region120: #{moco_forward_train.1} parent=1 // pred_region
      _
    $region121: #{moco_forward_train.1} parent=1 // pred_fallthru
      _
    // Predicated region
    $region122: #{moco_forward_train.1} parent=1 // pred_check
      _
    $region123: #{moco_forward_train.1} parent=1 // pred_check_branch
      %1167 = sbr.rel (0) target = $region125
    $region124: #{moco_forward_train.1} parent=1 // pred_region
      _
    $region125: #{moco_forward_train.1} parent=1 // pred_fallthru
      _
    // Predicated region
    $region126: #{moco_forward_train.1} parent=1 // pred_check
      _
    $region127: #{moco_forward_train.1} parent=1 // pred_check_branch
      %1169 = sbr.rel (0) target = $region129
    $region128: #{moco_forward_train.1} parent=1 // pred_region
      %s1171 = ssub.s32 16, 16
      %1172 = vsyncadd [#allocation9], %s1171
      %1175 = dma.smem_to_hbm [#allocation8], 16, %s17, [#allocation9]
    $region129: #{moco_forward_train.1} parent=1 // pred_fallthru
      _
    // Predicated region
    $region130: #{moco_forward_train.1} parent=1 // pred_check
      _
    $region131: #{moco_forward_train.1} parent=1 // pred_check_branch
      %1177 = sbr.rel (0) target = $region133
    $region132: #{moco_forward_train.1} parent=1 // pred_region
      %1178 = dma.done [#allocation7], 16
    $region133: #{moco_forward_train.1} parent=1 // pred_fallthru
      _
    // Predicated region
    $region134: #{moco_forward_train.1} parent=1 // pred_check
      _
    $region135: #{moco_forward_train.1} parent=1 // pred_check_branch
      %1180 = sbr.rel (0) target = $region137
    $region136: #{moco_forward_train.1} parent=1 // pred_region
      _
    $region137: #{moco_forward_train.1} parent=1 // pred_fallthru
      _
    // Predicated region
    $region138: #{moco_forward_train.1} parent=1 // pred_check
      _
    $region139: #{moco_forward_train.1} parent=1 // pred_check_branch
      %1182 = sbr.rel (0) target = $region141
    $region140: #{moco_forward_train.1} parent=1 // pred_region
      _
    $region141: #{moco_forward_train.1} parent=1 // pred_fallthru
      _
    // Predicated region
    $region142: #{moco_forward_train.1} parent=1 // pred_check
      _
    $region143: #{moco_forward_train.1} parent=1 // pred_check_branch
      %1184 = sbr.rel (0) target = $region145
    $region144: #{moco_forward_train.1} parent=1 // pred_region
      _
    $region145: #{moco_forward_train.1} parent=1 // pred_fallthru
      _
    // Predicated region
    $region146: #{moco_forward_train.1} parent=1 // pred_check
      _
    $region147: #{moco_forward_train.1} parent=1 // pred_check_branch
      %1186 = sbr.rel (0) target = $region149
    $region148: #{moco_forward_train.1} parent=1 // pred_region
      _
    $region149: #{moco_forward_train.1} parent=1 // pred_fallthru
      _
    // Predicated region
    $region150: #{moco_forward_train.1} parent=1 // pred_check
      _
    $region151: #{moco_forward_train.1} parent=1 // pred_check_branch
      %1188 = sbr.rel (0) target = $region153
    $region152: #{moco_forward_train.1} parent=1 // pred_region
      %1189 = dma.done [#allocation9], 16
    $region153: #{moco_forward_train.1} parent=1 // pred_fallthru
      _
    %1190 = sfence
    %1191 = vsyncpa [#allocation7], 1
    %1192 = vsyncpa [#allocation9], 1
  %1193 = vsyncmov [#allocation4]
  %s1194 = vpop.sfrf %1193
  %p1195 = scmp.eq.s32.totalorder %s1194, 0
  %p1196 = pneg %p1195
  %1198 = shalt.err (%p1196)
  %s1199 = scalar_lea.sflag [#allocation4], 1
  %1200 = vsyncmov %s1199
  %s1201 = vpop.sfrf %1200
  %p1202 = scmp.eq.s32.totalorder %s1201, 0
  %p1203 = pneg %p1202
  %1205 = shalt.err (%p1203)

</llo_original>
